<compile_context>
chip_gen: v7x
topology: tpu7x:2x2x1
jax: 0.10.0
libtpu: 0.0.40
codegen_flags: <defaults>
</compile_context>

<pallas_src>
import functools
import math

import jax
import jax.numpy as jnp
from jax.experimental import pallas as pl
from jax.experimental.pallas import tpu as pltpu

NEGATIVE_SLOPE = 0.2
MASK_BIAS = -1e30   # representable in bf16 (same exponent range as f32); exp(~-1e30) == 0.0
LANE = 128


def _gat_kernel(x_src_ref, x_dst_ref, w_ref, was_ref, wad_ref, adjb_ref, bias_ref,
                out_ref, *, heads, out_channels):
    """One destination-node block per grid step; all heads fused.

       x_src_ref [N, F]        node features, all source nodes (resident across the grid)
       x_dst_ref [T, F]        node features, this block's destination nodes
       w_ref     [F, H*C]      fused projection (== lin_src.weight.T)
       was_ref   [F, H]        W^T · attn_src  (source logit weights)
       wad_ref   [F, H]        W^T · attn_dst  (destination logit weights)
       adjb_ref  [T, N] bf16   additive adjacency bias for this dst block (0 edge / -1e30)
       bias_ref  [1, HC_PAD]   output bias, zero-padded to a 128-lane multiple
       out_ref   [T, HC_PAD]   concat-over-heads output (lane-dense padded slab)
    """
    H, C = heads, out_channels
    HC = H * C
    x_src = x_src_ref[...]                                                  # [N, F]
    n_src = x_src.shape[0]
    t_dst = out_ref.shape[0]
    hc_pad = out_ref.shape[1]

    # (1) all-heads / all-sources projection: one MXU matmul. z[:, h*C:(h+1)*C] = head h.
    z = jnp.dot(x_src, w_ref[...], preferred_element_type=jnp.float32)      # [N, HC]
    # (2) per-node attention logits straight from x (attn vectors folded into W).
    a_l = jnp.dot(x_src, was_ref[...], preferred_element_type=jnp.float32)  # [N, H]
    a_r = jnp.dot(x_dst_ref[...], wad_ref[...],
                  preferred_element_type=jnp.float32)                       # [T, H]

    # Analytic softmax shift (exact after normalization; softmax is shift-invariant):
    # leaky_relu is monotone => m[i,h] = lrelu(a_r[i,h] + max_j a_l[j,h]) >= row-max of
    # scores, so exp(s - m) <= 1 — and no O(H*N^2) XLU max-reduction.
    a_l_max = jnp.max(a_l, axis=0, keepdims=True)                           # [1, H]
    t = a_r + a_l_max
    m_all = jnp.where(t >= 0.0, t, NEGATIVE_SLOPE * t)                      # [T, H]

    a_l_t = jnp.transpose(a_l)                                              # [H, N]
    adjb = adjb_ref[...]                       # bf16; upcasts inside the f32 add below
    ones_col = jnp.ones((n_src, 1), jnp.float32)

    cols = []
    # H is small & static -> fully unrolled. (A fori_loop over heads would need dynamic
    # sub-128-lane slices of z; at large N a flash-style source-block loop is the proper
    # fix for live-range pressure instead.)
    for h in range(H):
        # scores[i, j] = leaky_relu(a_r[i] + a_l[j]) for edge j -> i, plus adjacency bias.
        s = a_r[:, h:h + 1] + a_l_t[h:h + 1, :]                             # [T, N]
        s = jnp.where(s >= 0.0, s, NEGATIVE_SLOPE * s)
        # bf16 exp would ~halve EUP cost on v6e/v7x; kept f32 to hold the tight tolerance.
        p = jnp.exp(s + adjb - m_all[:, h:h + 1])     # non-edges underflow to exactly 0
        # (3) fused aggregation + softmax denominator on the MXU: p @ [z_h | 1].
        zh1 = jnp.concatenate([z[:, h * C:(h + 1) * C], ones_col], axis=-1)  # [N, C+1]
        agg_d = jnp.dot(p, zh1, preferred_element_type=jnp.float32)          # [T, C+1]
        denom = agg_d[:, C:C + 1]   # > 0: requires add_self_loops (every dst row has an edge)
        cols.append(agg_d[:, :C] * pl.reciprocal(denom, approx=False))

    # (4) single lane-dense store of the padded concat layout [T, HC_PAD], plus bias.
    if hc_pad > HC:
        cols.append(jnp.zeros((t_dst, hc_pad - HC), jnp.float32))
    out_ref[...] = jnp.concatenate(cols, axis=-1) + bias_ref[...]
    # TODO(synk): F.dropout on attention coefficients (p=0.6) skipped — eval-mode forward.


def prepare_gat_params(w_src, attn_src, attn_dst, bias):
    """One-time parameter layout prep (hoisted out of the per-call path).
    w_src: [H*C, F] PyTorch Linear weight; attn_src/attn_dst: [1, H, C]; bias: [H*C]."""
    _, H, C = attn_src.shape
    HC = H * C
    f_in = w_src.shape[1]
    hc_pad = ((HC + LANE - 1) // LANE) * LANE
    w_all = jnp.transpose(w_src).astype(jnp.float32)                 # [F, HC]; z = x @ w_all
    hi = jax.lax.Precision.HIGHEST
    wa_src = jnp.einsum("fhc,hc->fh", w_all.reshape(f_in, H, C),
                        attn_src.reshape(H, C), precision=hi)        # [F, H]
    wa_dst = jnp.einsum("fhc,hc->fh", w_all.reshape(f_in, H, C),
                        attn_dst.reshape(H, C), precision=hi)        # [F, H]
    bias_pad = jnp.zeros((1, hc_pad), jnp.float32).at[0, :HC].set(bias)
    return w_all, wa_src, wa_dst, bias_pad


def prepare_adj_bias(adj):
    """adj[dst, src] -> additive softmax bias in bf16 (halves HBM/VMEM footprint exactly).
    Requires self-loops: every destination row must have at least one edge, otherwise the
    softmax denominator would be 0 (the PyTorch module calls add_self_loops)."""
    return jnp.where(adj > 0.0, 0.0, MASK_BIAS).astype(jnp.bfloat16)


def gat_conv_forward(x, adj_bias, w_all, wa_src, wa_dst, bias_pad, *,
                     heads, out_channels, tile_dst=None):
    """x: [N, F] f32; adj_bias: [N, N] bf16; returns [N, heads*out_channels] f32."""
    N, f_in = x.shape
    H, C = heads, out_channels
    HC = H * C
    hc_pad = bias_pad.shape[1]

    # Destination-node tile. Generation sweet spots: ~512-1024 (v5e/v6e, 128 MiB VMEM),
    # ~256 (v7x, 64 MiB). Must be a multiple of 8 dividing N (else fall back to one block).
    if tile_dst is None:
        tile_dst = min(N, 512)
    if tile_dst % 8 != 0 or N % tile_dst != 0:
        tile_dst = N
    grid = (N // tile_dst,)

    kernel = functools.partial(_gat_kernel, heads=H, out_channels=C)
    cost = pl.CostEstimate(
        flops=int(2 * N * f_in * (HC + 2 * H) * grid[0]
                  + 2 * H * N * N * (C + 1) + 6 * H * N * N),
        transcendentals=int(H * N * N),
        bytes_accessed=int(N * N * 2 + N * f_in * 4 + f_in * (HC + 2 * H) * 4
                           + N * hc_pad * 4),
    )

    out = pl.pallas_call(
        kernel,
        out_shape=jax.ShapeDtypeStruct((N, hc_pad), jnp.float32),
        grid=grid,
        in_specs=[
            pl.BlockSpec((N, f_in), lambda i: (0, 0)),          # x: all source nodes (resident)
            pl.BlockSpec((tile_dst, f_in), lambda i: (i, 0)),   # x: this block's dst nodes
            pl.BlockSpec((f_in, HC), lambda i: (0, 0)),         # w_all
            pl.BlockSpec((f_in, H), lambda i: (0, 0)),          # wa_src
            pl.BlockSpec((f_in, H), lambda i: (0, 0)),          # wa_dst
            pl.BlockSpec((tile_dst, N), lambda i: (i, 0)),      # adjacency bias tile (bf16)
            pl.BlockSpec((1, hc_pad), lambda i: (0, 0)),        # padded output bias
        ],
        out_specs=pl.BlockSpec((tile_dst, hc_pad), lambda i: (i, 0)),
        compiler_params=pltpu.CompilerParams(
            dimension_semantics=("parallel",),     # independent dst blocks; megacore-shardable
            vmem_limit_bytes=64 * 1024 * 1024,     # headroom above the 16/32 MiB scoped default
        ),
        cost_estimate=cost,
    )(x, x, w_all, wa_src, wa_dst, adj_bias, bias_pad)
    return out[:, :HC]


def _glorot(key, shape):
    fan_in, fan_out = shape[-1], shape[-2] if len(shape) > 1 else shape[-1]
    limit = math.sqrt(6.0 / (fan_in + fan_out))
    return jax.random.uniform(key, shape, jnp.float32, -limit, limit)


def _reference(x, adj, w_src, attn_src, attn_dst, bias):
    """Pure-JAX dense reference of the same forward pass, for validation."""
    N, _ = x.shape
    _, H, C = attn_src.shape
    z = (x @ w_src.T).reshape(N, H, C)
    a_l = jnp.sum(z * attn_src, axis=-1)   # [N, H]
    a_r = jnp.sum(z * attn_dst, axis=-1)   # [N, H]
    s = a_r.T[:, :, None] + a_l.T[:, None, :]          # [H, N, N]
    s = jnp.where(s >= 0.0, s, NEGATIVE_SLOPE * s)
    mask = adj[None, :, :] > 0.0
    s = jnp.where(mask, s, -1e30)
    p = jnp.where(mask, jnp.exp(s - jnp.max(s, axis=-1, keepdims=True)), 0.0)
    attn = p / jnp.sum(p, axis=-1, keepdims=True)
    out = jnp.einsum("hij,jhc->ihc", attn, z)          # [N, H, C]
    return out.reshape(N, H * C) + bias


if __name__ == "__main__":
    # Small deterministic problem: N nodes, F_in input feats, H heads, C out channels.
    N, F_IN, H, C = 16, 16, 8, 8

    key = jax.random.PRNGKey(0)
    k_x, k_w, k_as, k_ad = jax.random.split(key, 4)

    x = jax.random.normal(k_x, (N, F_IN), jnp.float32)
    w_src = _glorot(k_w, (H * C, F_IN))                # lin_src.weight, PyTorch layout
    attn_src = _glorot(k_as, (1, H, C))
    attn_dst = _glorot(k_ad, (1, H, C))
    bias = jnp.zeros((H * C,), jnp.float32)            # zeros(bias) in reset_parameters

    # Deterministic graph: ring edges i -> (i+1) % N and i -> (i+3) % N (no self loops),
    # then add_self_loops -> diag = 1. adj[dst, src] = 1 if edge src -> dst.
    src = jnp.concatenate([jnp.arange(N), jnp.arange(N)])
    dst = jnp.concatenate([(jnp.arange(N) + 1) % N, (jnp.arange(N) + 3) % N])
    adj = jnp.zeros((N, N), jnp.float32).at[dst, src].set(1.0)
    adj = adj.at[jnp.arange(N), jnp.arange(N)].set(1.0)   # add_self_loops (softmax denom > 0)

    # One-time layout prep (hoisted out of the per-call path).
    w_all, wa_src, wa_dst, bias_pad = prepare_gat_params(w_src, attn_src, attn_dst, bias)
    adj_bias = prepare_adj_bias(adj)

    # tile_dst=8 exercises the gridded (2-step, "parallel") path even at this tiny N.
    out = gat_conv_forward(x, adj_bias, w_all, wa_src, wa_dst, bias_pad,
                           heads=H, out_channels=C, tile_dst=8)
    out = jax.block_until_ready(out)

    ref = _reference(x, adj, w_src, attn_src, attn_dst, bias)
    assert out.shape == (N, H * C)
    max_err = float(jnp.max(jnp.abs(out - ref)))
    assert jnp.allclose(out, ref, atol=2e-4, rtol=2e-4), max_err

    print("KERNEL_OK")
</pallas_src>

<mosaic_0001>
module attributes {stable_mosaic.version = 11 : i64} {
  func.func @_gat_kernel(%arg0: i32, %arg1: memref<16x16xf32, #tpu.memory_space<vmem>>, %arg2: memref<8x16xf32, #tpu.memory_space<vmem>>, %arg3: memref<16x64xf32, #tpu.memory_space<vmem>>, %arg4: memref<16x8xf32, #tpu.memory_space<vmem>>, %arg5: memref<16x8xf32, #tpu.memory_space<vmem>>, %arg6: memref<8x16xbf16, #tpu.memory_space<vmem>>, %arg7: memref<1x128xf32, #tpu.memory_space<vmem>>, %arg8: memref<8x128xf32, #tpu.memory_space<vmem>>) attributes {dimension_semantics = [#tpu.dimension_semantics<parallel>], iteration_bounds = array<i64: 2>, scalar_prefetch = 0 : i64, scratch_operands = 0 : i64, tpu.core_type = #tpu.core_type<tc>, window_params = [{pipeline_mode = #tpu.pipeline_mode<synchronous>, transform_indices = @transform_0, window_bounds = array<i64: 16, 16>}, {transform_indices = @transform_1, window_bounds = array<i64: 8, 16>}, {pipeline_mode = #tpu.pipeline_mode<synchronous>, transform_indices = @transform_2, window_bounds = array<i64: 16, 64>}, {pipeline_mode = #tpu.pipeline_mode<synchronous>, transform_indices = @transform_3, window_bounds = array<i64: 16, 8>}, {pipeline_mode = #tpu.pipeline_mode<synchronous>, transform_indices = @transform_4, window_bounds = array<i64: 16, 8>}, {transform_indices = @transform_5, window_bounds = array<i64: 8, 16>}, {pipeline_mode = #tpu.pipeline_mode<synchronous>, transform_indices = @transform_6, window_bounds = array<i64: 1, 128>}, {transform_indices = @transform_7, window_bounds = array<i64: 8, 128>}]} {
    %c0 = arith.constant 0 : index
    %c0_0 = arith.constant 0 : index
    %0 = vector.load %arg1[%c0, %c0_0] : memref<16x16xf32, #tpu.memory_space<vmem>>, vector<16x16xf32>
    %c0_1 = arith.constant 0 : index
    %c0_2 = arith.constant 0 : index
    %1 = vector.load %arg3[%c0_1, %c0_2] : memref<16x64xf32, #tpu.memory_space<vmem>>, vector<16x64xf32>
    %cst = arith.constant dense<0.000000e+00> : vector<16x64xf32>
    %2 = tpu.matmul %0, %1, %cst {dimension_numbers = #tpu.dot_dimension_numbers<[1], [0], [0], [1], [0, 0, 1, 1], [], []>} : vector<16x16xf32>, vector<16x64xf32>, vector<16x64xf32> -> vector<16x64xf32>
    %c0_3 = arith.constant 0 : index
    %c0_4 = arith.constant 0 : index
    %3 = vector.load %arg4[%c0_3, %c0_4] : memref<16x8xf32, #tpu.memory_space<vmem>>, vector<16x8xf32>
    %cst_5 = arith.constant dense<0.000000e+00> : vector<16x8xf32>
    %4 = tpu.matmul %0, %3, %cst_5 {dimension_numbers = #tpu.dot_dimension_numbers<[1], [0], [0], [1], [0, 0, 1, 1], [], []>} : vector<16x16xf32>, vector<16x8xf32>, vector<16x8xf32> -> vector<16x8xf32>
    %c0_6 = arith.constant 0 : index
    %c0_7 = arith.constant 0 : index
    %5 = vector.load %arg2[%c0_6, %c0_7] : memref<8x16xf32, #tpu.memory_space<vmem>>, vector<8x16xf32>
    %c0_8 = arith.constant 0 : index
    %c0_9 = arith.constant 0 : index
    %6 = vector.load %arg5[%c0_8, %c0_9] : memref<16x8xf32, #tpu.memory_space<vmem>>, vector<16x8xf32>
    %cst_10 = arith.constant dense<0.000000e+00> : vector<8x8xf32>
    %7 = tpu.matmul %5, %6, %cst_10 {dimension_numbers = #tpu.dot_dimension_numbers<[1], [0], [0], [1], [0, 0, 1, 1], [], []>} : vector<8x16xf32>, vector<16x8xf32>, vector<8x8xf32> -> vector<8x8xf32>
    %cst_11 = arith.constant dense<0xFF800000> : vector<8xf32>
    %8 = vector.multi_reduction <maximumf>, %4, %cst_11 [0] : vector<16x8xf32> to vector<8xf32>
    %9 = vector.shape_cast %8 : vector<8xf32> to vector<1x8xf32>
    %10 = vector.broadcast %9 : vector<1x8xf32> to vector<8x8xf32>
    %11 = arith.addf %7, %10 : vector<8x8xf32>
    %cst_12 = arith.constant 0.000000e+00 : f32
    %12 = vector.broadcast %cst_12 : f32 to vector<8x8xf32>
    %13 = arith.cmpf oge, %11, %12 : vector<8x8xf32>
    %cst_13 = arith.constant 2.000000e-01 : f32
    %14 = vector.broadcast %cst_13 : f32 to vector<8x8xf32>
    %15 = arith.mulf %14, %11 : vector<8x8xf32>
    %16 = arith.select %13, %11, %15 : vector<8x8xi1>, vector<8x8xf32>
    %17 = tpu.transpose %4, [1, 0] : vector<16x8xf32> -> vector<8x16xf32>
    %c0_14 = arith.constant 0 : index
    %c0_15 = arith.constant 0 : index
    %18 = vector.load %arg6[%c0_14, %c0_15] : memref<8x16xbf16, #tpu.memory_space<vmem>>, vector<8x16xbf16>
    %cst_16 = arith.constant 1.000000e+00 : f32
    %19 = vector.broadcast %cst_16 : f32 to vector<16x1xf32>
    %20 = vector.extract_strided_slice %7 {offsets = [0, 0], sizes = [8, 1], strides = [1, 1]} : vector<8x8xf32> to vector<8x1xf32>
    %21 = vector.extract_strided_slice %17 {offsets = [0, 0], sizes = [1, 16], strides = [1, 1]} : vector<8x16xf32> to vector<1x16xf32>
    %22 = vector.broadcast %20 : vector<8x1xf32> to vector<8x16xf32>
    %23 = vector.broadcast %21 : vector<1x16xf32> to vector<8x16xf32>
    %24 = arith.addf %22, %23 : vector<8x16xf32>
    %cst_17 = arith.constant 0.000000e+00 : f32
    %25 = vector.broadcast %cst_17 : f32 to vector<8x16xf32>
    %26 = arith.cmpf oge, %24, %25 : vector<8x16xf32>
    %cst_18 = arith.constant 2.000000e-01 : f32
    %27 = vector.broadcast %cst_18 : f32 to vector<8x16xf32>
    %28 = arith.mulf %27, %24 : vector<8x16xf32>
    %29 = arith.select %26, %24, %28 : vector<8x16xi1>, vector<8x16xf32>
    %30 = arith.extf %18 : vector<8x16xbf16> to vector<8x16xf32>
    %31 = arith.addf %29, %30 : vector<8x16xf32>
    %32 = vector.extract_strided_slice %16 {offsets = [0, 0], sizes = [8, 1], strides = [1, 1]} : vector<8x8xf32> to vector<8x1xf32>
    %33 = vector.broadcast %32 : vector<8x1xf32> to vector<8x16xf32>
    %34 = arith.subf %31, %33 : vector<8x16xf32>
    %35 = math.exp %34 : vector<8x16xf32>
    %36 = vector.extract_strided_slice %2 {offsets = [0, 0], sizes = [16, 8], strides = [1, 1]} : vector<16x64xf32> to vector<16x8xf32>
    %37 = tpu.concatenate %36, %19 in 1 : vector<16x8xf32>, vector<16x1xf32> -> vector<16x9xf32>
    %cst_19 = arith.constant dense<0.000000e+00> : vector<8x9xf32>
    %38 = tpu.matmul %35, %37, %cst_19 {dimension_numbers = #tpu.dot_dimension_numbers<[1], [0], [0], [1], [0, 0, 1, 1], [], []>} : vector<8x16xf32>, vector<16x9xf32>, vector<8x9xf32> -> vector<8x9xf32>
    %39 = vector.extract_strided_slice %38 {offsets = [0, 8], sizes = [8, 1], strides = [1, 1]} : vector<8x9xf32> to vector<8x1xf32>
    %40 = vector.extract_strided_slice %38 {offsets = [0, 0], sizes = [8, 8], strides = [1, 1]} : vector<8x9xf32> to vector<8x8xf32>
    %41 = tpu.reciprocal %39 : vector<8x1xf32> -> vector<8x1xf32>
    %42 = vector.broadcast %41 : vector<8x1xf32> to vector<8x8xf32>
    %43 = arith.mulf %40, %42 : vector<8x8xf32>
    %44 = vector.extract_strided_slice %7 {offsets = [0, 1], sizes = [8, 1], strides = [1, 1]} : vector<8x8xf32> to vector<8x1xf32>
    %45 = vector.extract_strided_slice %17 {offsets = [1, 0], sizes = [1, 16], strides = [1, 1]} : vector<8x16xf32> to vector<1x16xf32>
    %46 = vector.broadcast %44 : vector<8x1xf32> to vector<8x16xf32>
    %47 = vector.broadcast %45 : vector<1x16xf32> to vector<8x16xf32>
    %48 = arith.addf %46, %47 : vector<8x16xf32>
    %cst_20 = arith.constant 0.000000e+00 : f32
    %49 = vector.broadcast %cst_20 : f32 to vector<8x16xf32>
    %50 = arith.cmpf oge, %48, %49 : vector<8x16xf32>
    %cst_21 = arith.constant 2.000000e-01 : f32
    %51 = vector.broadcast %cst_21 : f32 to vector<8x16xf32>
    %52 = arith.mulf %51, %48 : vector<8x16xf32>
    %53 = arith.select %50, %48, %52 : vector<8x16xi1>, vector<8x16xf32>
    %54 = arith.extf %18 : vector<8x16xbf16> to vector<8x16xf32>
    %55 = arith.addf %53, %54 : vector<8x16xf32>
    %56 = vector.extract_strided_slice %16 {offsets = [0, 1], sizes = [8, 1], strides = [1, 1]} : vector<8x8xf32> to vector<8x1xf32>
    %57 = vector.broadcast %56 : vector<8x1xf32> to vector<8x16xf32>
    %58 = arith.subf %55, %57 : vector<8x16xf32>
    %59 = math.exp %58 : vector<8x16xf32>
    %60 = vector.extract_strided_slice %2 {offsets = [0, 8], sizes = [16, 8], strides = [1, 1]} : vector<16x64xf32> to vector<16x8xf32>
    %61 = tpu.concatenate %60, %19 in 1 : vector<16x8xf32>, vector<16x1xf32> -> vector<16x9xf32>
    %cst_22 = arith.constant dense<0.000000e+00> : vector<8x9xf32>
    %62 = tpu.matmul %59, %61, %cst_22 {dimension_numbers = #tpu.dot_dimension_numbers<[1], [0], [0], [1], [0, 0, 1, 1], [], []>} : vector<8x16xf32>, vector<16x9xf32>, vector<8x9xf32> -> vector<8x9xf32>
    %63 = vector.extract_strided_slice %62 {offsets = [0, 8], sizes = [8, 1], strides = [1, 1]} : vector<8x9xf32> to vector<8x1xf32>
    %64 = vector.extract_strided_slice %62 {offsets = [0, 0], sizes = [8, 8], strides = [1, 1]} : vector<8x9xf32> to vector<8x8xf32>
    %65 = tpu.reciprocal %63 : vector<8x1xf32> -> vector<8x1xf32>
    %66 = vector.broadcast %65 : vector<8x1xf32> to vector<8x8xf32>
    %67 = arith.mulf %64, %66 : vector<8x8xf32>
    %68 = vector.extract_strided_slice %7 {offsets = [0, 2], sizes = [8, 1], strides = [1, 1]} : vector<8x8xf32> to vector<8x1xf32>
    %69 = vector.extract_strided_slice %17 {offsets = [2, 0], sizes = [1, 16], strides = [1, 1]} : vector<8x16xf32> to vector<1x16xf32>
    %70 = vector.broadcast %68 : vector<8x1xf32> to vector<8x16xf32>
    %71 = vector.broadcast %69 : vector<1x16xf32> to vector<8x16xf32>
    %72 = arith.addf %70, %71 : vector<8x16xf32>
    %cst_23 = arith.constant 0.000000e+00 : f32
    %73 = vector.broadcast %cst_23 : f32 to vector<8x16xf32>
    %74 = arith.cmpf oge, %72, %73 : vector<8x16xf32>
    %cst_24 = arith.constant 2.000000e-01 : f32
    %75 = vector.broadcast %cst_24 : f32 to vector<8x16xf32>
    %76 = arith.mulf %75, %72 : vector<8x16xf32>
    %77 = arith.select %74, %72, %76 : vector<8x16xi1>, vector<8x16xf32>
    %78 = arith.extf %18 : vector<8x16xbf16> to vector<8x16xf32>
    %79 = arith.addf %77, %78 : vector<8x16xf32>
    %80 = vector.extract_strided_slice %16 {offsets = [0, 2], sizes = [8, 1], strides = [1, 1]} : vector<8x8xf32> to vector<8x1xf32>
    %81 = vector.broadcast %80 : vector<8x1xf32> to vector<8x16xf32>
    %82 = arith.subf %79, %81 : vector<8x16xf32>
    %83 = math.exp %82 : vector<8x16xf32>
    %84 = vector.extract_strided_slice %2 {offsets = [0, 16], sizes = [16, 8], strides = [1, 1]} : vector<16x64xf32> to vector<16x8xf32>
    %85 = tpu.concatenate %84, %19 in 1 : vector<16x8xf32>, vector<16x1xf32> -> vector<16x9xf32>
    %cst_25 = arith.constant dense<0.000000e+00> : vector<8x9xf32>
    %86 = tpu.matmul %83, %85, %cst_25 {dimension_numbers = #tpu.dot_dimension_numbers<[1], [0], [0], [1], [0, 0, 1, 1], [], []>} : vector<8x16xf32>, vector<16x9xf32>, vector<8x9xf32> -> vector<8x9xf32>
    %87 = vector.extract_strided_slice %86 {offsets = [0, 8], sizes = [8, 1], strides = [1, 1]} : vector<8x9xf32> to vector<8x1xf32>
    %88 = vector.extract_strided_slice %86 {offsets = [0, 0], sizes = [8, 8], strides = [1, 1]} : vector<8x9xf32> to vector<8x8xf32>
    %89 = tpu.reciprocal %87 : vector<8x1xf32> -> vector<8x1xf32>
    %90 = vector.broadcast %89 : vector<8x1xf32> to vector<8x8xf32>
    %91 = arith.mulf %88, %90 : vector<8x8xf32>
    %92 = vector.extract_strided_slice %7 {offsets = [0, 3], sizes = [8, 1], strides = [1, 1]} : vector<8x8xf32> to vector<8x1xf32>
    %93 = vector.extract_strided_slice %17 {offsets = [3, 0], sizes = [1, 16], strides = [1, 1]} : vector<8x16xf32> to vector<1x16xf32>
    %94 = vector.broadcast %92 : vector<8x1xf32> to vector<8x16xf32>
    %95 = vector.broadcast %93 : vector<1x16xf32> to vector<8x16xf32>
    %96 = arith.addf %94, %95 : vector<8x16xf32>
    %cst_26 = arith.constant 0.000000e+00 : f32
    %97 = vector.broadcast %cst_26 : f32 to vector<8x16xf32>
    %98 = arith.cmpf oge, %96, %97 : vector<8x16xf32>
    %cst_27 = arith.constant 2.000000e-01 : f32
    %99 = vector.broadcast %cst_27 : f32 to vector<8x16xf32>
    %100 = arith.mulf %99, %96 : vector<8x16xf32>
    %101 = arith.select %98, %96, %100 : vector<8x16xi1>, vector<8x16xf32>
    %102 = arith.extf %18 : vector<8x16xbf16> to vector<8x16xf32>
    %103 = arith.addf %101, %102 : vector<8x16xf32>
    %104 = vector.extract_strided_slice %16 {offsets = [0, 3], sizes = [8, 1], strides = [1, 1]} : vector<8x8xf32> to vector<8x1xf32>
    %105 = vector.broadcast %104 : vector<8x1xf32> to vector<8x16xf32>
    %106 = arith.subf %103, %105 : vector<8x16xf32>
    %107 = math.exp %106 : vector<8x16xf32>
    %108 = vector.extract_strided_slice %2 {offsets = [0, 24], sizes = [16, 8], strides = [1, 1]} : vector<16x64xf32> to vector<16x8xf32>
    %109 = tpu.concatenate %108, %19 in 1 : vector<16x8xf32>, vector<16x1xf32> -> vector<16x9xf32>
    %cst_28 = arith.constant dense<0.000000e+00> : vector<8x9xf32>
    %110 = tpu.matmul %107, %109, %cst_28 {dimension_numbers = #tpu.dot_dimension_numbers<[1], [0], [0], [1], [0, 0, 1, 1], [], []>} : vector<8x16xf32>, vector<16x9xf32>, vector<8x9xf32> -> vector<8x9xf32>
    %111 = vector.extract_strided_slice %110 {offsets = [0, 8], sizes = [8, 1], strides = [1, 1]} : vector<8x9xf32> to vector<8x1xf32>
    %112 = vector.extract_strided_slice %110 {offsets = [0, 0], sizes = [8, 8], strides = [1, 1]} : vector<8x9xf32> to vector<8x8xf32>
    %113 = tpu.reciprocal %111 : vector<8x1xf32> -> vector<8x1xf32>
    %114 = vector.broadcast %113 : vector<8x1xf32> to vector<8x8xf32>
    %115 = arith.mulf %112, %114 : vector<8x8xf32>
    %116 = vector.extract_strided_slice %7 {offsets = [0, 4], sizes = [8, 1], strides = [1, 1]} : vector<8x8xf32> to vector<8x1xf32>
    %117 = vector.extract_strided_slice %17 {offsets = [4, 0], sizes = [1, 16], strides = [1, 1]} : vector<8x16xf32> to vector<1x16xf32>
    %118 = vector.broadcast %116 : vector<8x1xf32> to vector<8x16xf32>
    %119 = vector.broadcast %117 : vector<1x16xf32> to vector<8x16xf32>
    %120 = arith.addf %118, %119 : vector<8x16xf32>
    %cst_29 = arith.constant 0.000000e+00 : f32
    %121 = vector.broadcast %cst_29 : f32 to vector<8x16xf32>
    %122 = arith.cmpf oge, %120, %121 : vector<8x16xf32>
    %cst_30 = arith.constant 2.000000e-01 : f32
    %123 = vector.broadcast %cst_30 : f32 to vector<8x16xf32>
    %124 = arith.mulf %123, %120 : vector<8x16xf32>
    %125 = arith.select %122, %120, %124 : vector<8x16xi1>, vector<8x16xf32>
    %126 = arith.extf %18 : vector<8x16xbf16> to vector<8x16xf32>
    %127 = arith.addf %125, %126 : vector<8x16xf32>
    %128 = vector.extract_strided_slice %16 {offsets = [0, 4], sizes = [8, 1], strides = [1, 1]} : vector<8x8xf32> to vector<8x1xf32>
    %129 = vector.broadcast %128 : vector<8x1xf32> to vector<8x16xf32>
    %130 = arith.subf %127, %129 : vector<8x16xf32>
    %131 = math.exp %130 : vector<8x16xf32>
    %132 = vector.extract_strided_slice %2 {offsets = [0, 32], sizes = [16, 8], strides = [1, 1]} : vector<16x64xf32> to vector<16x8xf32>
    %133 = tpu.concatenate %132, %19 in 1 : vector<16x8xf32>, vector<16x1xf32> -> vector<16x9xf32>
    %cst_31 = arith.constant dense<0.000000e+00> : vector<8x9xf32>
    %134 = tpu.matmul %131, %133, %cst_31 {dimension_numbers = #tpu.dot_dimension_numbers<[1], [0], [0], [1], [0, 0, 1, 1], [], []>} : vector<8x16xf32>, vector<16x9xf32>, vector<8x9xf32> -> vector<8x9xf32>
    %135 = vector.extract_strided_slice %134 {offsets = [0, 8], sizes = [8, 1], strides = [1, 1]} : vector<8x9xf32> to vector<8x1xf32>
    %136 = vector.extract_strided_slice %134 {offsets = [0, 0], sizes = [8, 8], strides = [1, 1]} : vector<8x9xf32> to vector<8x8xf32>
    %137 = tpu.reciprocal %135 : vector<8x1xf32> -> vector<8x1xf32>
    %138 = vector.broadcast %137 : vector<8x1xf32> to vector<8x8xf32>
    %139 = arith.mulf %136, %138 : vector<8x8xf32>
    %140 = vector.extract_strided_slice %7 {offsets = [0, 5], sizes = [8, 1], strides = [1, 1]} : vector<8x8xf32> to vector<8x1xf32>
    %141 = vector.extract_strided_slice %17 {offsets = [5, 0], sizes = [1, 16], strides = [1, 1]} : vector<8x16xf32> to vector<1x16xf32>
    %142 = vector.broadcast %140 : vector<8x1xf32> to vector<8x16xf32>
    %143 = vector.broadcast %141 : vector<1x16xf32> to vector<8x16xf32>
    %144 = arith.addf %142, %143 : vector<8x16xf32>
    %cst_32 = arith.constant 0.000000e+00 : f32
    %145 = vector.broadcast %cst_32 : f32 to vector<8x16xf32>
    %146 = arith.cmpf oge, %144, %145 : vector<8x16xf32>
    %cst_33 = arith.constant 2.000000e-01 : f32
    %147 = vector.broadcast %cst_33 : f32 to vector<8x16xf32>
    %148 = arith.mulf %147, %144 : vector<8x16xf32>
    %149 = arith.select %146, %144, %148 : vector<8x16xi1>, vector<8x16xf32>
    %150 = arith.extf %18 : vector<8x16xbf16> to vector<8x16xf32>
    %151 = arith.addf %149, %150 : vector<8x16xf32>
    %152 = vector.extract_strided_slice %16 {offsets = [0, 5], sizes = [8, 1], strides = [1, 1]} : vector<8x8xf32> to vector<8x1xf32>
    %153 = vector.broadcast %152 : vector<8x1xf32> to vector<8x16xf32>
    %154 = arith.subf %151, %153 : vector<8x16xf32>
    %155 = math.exp %154 : vector<8x16xf32>
    %156 = vector.extract_strided_slice %2 {offsets = [0, 40], sizes = [16, 8], strides = [1, 1]} : vector<16x64xf32> to vector<16x8xf32>
    %157 = tpu.concatenate %156, %19 in 1 : vector<16x8xf32>, vector<16x1xf32> -> vector<16x9xf32>
    %cst_34 = arith.constant dense<0.000000e+00> : vector<8x9xf32>
    %158 = tpu.matmul %155, %157, %cst_34 {dimension_numbers = #tpu.dot_dimension_numbers<[1], [0], [0], [1], [0, 0, 1, 1], [], []>} : vector<8x16xf32>, vector<16x9xf32>, vector<8x9xf32> -> vector<8x9xf32>
    %159 = vector.extract_strided_slice %158 {offsets = [0, 8], sizes = [8, 1], strides = [1, 1]} : vector<8x9xf32> to vector<8x1xf32>
    %160 = vector.extract_strided_slice %158 {offsets = [0, 0], sizes = [8, 8], strides = [1, 1]} : vector<8x9xf32> to vector<8x8xf32>
    %161 = tpu.reciprocal %159 : vector<8x1xf32> -> vector<8x1xf32>
    %162 = vector.broadcast %161 : vector<8x1xf32> to vector<8x8xf32>
    %163 = arith.mulf %160, %162 : vector<8x8xf32>
    %164 = vector.extract_strided_slice %7 {offsets = [0, 6], sizes = [8, 1], strides = [1, 1]} : vector<8x8xf32> to vector<8x1xf32>
    %165 = vector.extract_strided_slice %17 {offsets = [6, 0], sizes = [1, 16], strides = [1, 1]} : vector<8x16xf32> to vector<1x16xf32>
    %166 = vector.broadcast %164 : vector<8x1xf32> to vector<8x16xf32>
    %167 = vector.broadcast %165 : vector<1x16xf32> to vector<8x16xf32>
    %168 = arith.addf %166, %167 : vector<8x16xf32>
    %cst_35 = arith.constant 0.000000e+00 : f32
    %169 = vector.broadcast %cst_35 : f32 to vector<8x16xf32>
    %170 = arith.cmpf oge, %168, %169 : vector<8x16xf32>
    %cst_36 = arith.constant 2.000000e-01 : f32
    %171 = vector.broadcast %cst_36 : f32 to vector<8x16xf32>
    %172 = arith.mulf %171, %168 : vector<8x16xf32>
    %173 = arith.select %170, %168, %172 : vector<8x16xi1>, vector<8x16xf32>
    %174 = arith.extf %18 : vector<8x16xbf16> to vector<8x16xf32>
    %175 = arith.addf %173, %174 : vector<8x16xf32>
    %176 = vector.extract_strided_slice %16 {offsets = [0, 6], sizes = [8, 1], strides = [1, 1]} : vector<8x8xf32> to vector<8x1xf32>
    %177 = vector.broadcast %176 : vector<8x1xf32> to vector<8x16xf32>
    %178 = arith.subf %175, %177 : vector<8x16xf32>
    %179 = math.exp %178 : vector<8x16xf32>
    %180 = vector.extract_strided_slice %2 {offsets = [0, 48], sizes = [16, 8], strides = [1, 1]} : vector<16x64xf32> to vector<16x8xf32>
    %181 = tpu.concatenate %180, %19 in 1 : vector<16x8xf32>, vector<16x1xf32> -> vector<16x9xf32>
    %cst_37 = arith.constant dense<0.000000e+00> : vector<8x9xf32>
    %182 = tpu.matmul %179, %181, %cst_37 {dimension_numbers = #tpu.dot_dimension_numbers<[1], [0], [0], [1], [0, 0, 1, 1], [], []>} : vector<8x16xf32>, vector<16x9xf32>, vector<8x9xf32> -> vector<8x9xf32>
    %183 = vector.extract_strided_slice %182 {offsets = [0, 8], sizes = [8, 1], strides = [1, 1]} : vector<8x9xf32> to vector<8x1xf32>
    %184 = vector.extract_strided_slice %182 {offsets = [0, 0], sizes = [8, 8], strides = [1, 1]} : vector<8x9xf32> to vector<8x8xf32>
    %185 = tpu.reciprocal %183 : vector<8x1xf32> -> vector<8x1xf32>
    %186 = vector.broadcast %185 : vector<8x1xf32> to vector<8x8xf32>
    %187 = arith.mulf %184, %186 : vector<8x8xf32>
    %188 = vector.extract_strided_slice %7 {offsets = [0, 7], sizes = [8, 1], strides = [1, 1]} : vector<8x8xf32> to vector<8x1xf32>
    %189 = vector.extract_strided_slice %17 {offsets = [7, 0], sizes = [1, 16], strides = [1, 1]} : vector<8x16xf32> to vector<1x16xf32>
    %190 = vector.broadcast %188 : vector<8x1xf32> to vector<8x16xf32>
    %191 = vector.broadcast %189 : vector<1x16xf32> to vector<8x16xf32>
    %192 = arith.addf %190, %191 : vector<8x16xf32>
    %cst_38 = arith.constant 0.000000e+00 : f32
    %193 = vector.broadcast %cst_38 : f32 to vector<8x16xf32>
    %194 = arith.cmpf oge, %192, %193 : vector<8x16xf32>
    %cst_39 = arith.constant 2.000000e-01 : f32
    %195 = vector.broadcast %cst_39 : f32 to vector<8x16xf32>
    %196 = arith.mulf %195, %192 : vector<8x16xf32>
    %197 = arith.select %194, %192, %196 : vector<8x16xi1>, vector<8x16xf32>
    %198 = arith.extf %18 : vector<8x16xbf16> to vector<8x16xf32>
    %199 = arith.addf %197, %198 : vector<8x16xf32>
    %200 = vector.extract_strided_slice %16 {offsets = [0, 7], sizes = [8, 1], strides = [1, 1]} : vector<8x8xf32> to vector<8x1xf32>
    %201 = vector.broadcast %200 : vector<8x1xf32> to vector<8x16xf32>
    %202 = arith.subf %199, %201 : vector<8x16xf32>
    %203 = math.exp %202 : vector<8x16xf32>
    %204 = vector.extract_strided_slice %2 {offsets = [0, 56], sizes = [16, 8], strides = [1, 1]} : vector<16x64xf32> to vector<16x8xf32>
    %205 = tpu.concatenate %204, %19 in 1 : vector<16x8xf32>, vector<16x1xf32> -> vector<16x9xf32>
    %cst_40 = arith.constant dense<0.000000e+00> : vector<8x9xf32>
    %206 = tpu.matmul %203, %205, %cst_40 {dimension_numbers = #tpu.dot_dimension_numbers<[1], [0], [0], [1], [0, 0, 1, 1], [], []>} : vector<8x16xf32>, vector<16x9xf32>, vector<8x9xf32> -> vector<8x9xf32>
    %207 = vector.extract_strided_slice %206 {offsets = [0, 8], sizes = [8, 1], strides = [1, 1]} : vector<8x9xf32> to vector<8x1xf32>
    %208 = vector.extract_strided_slice %206 {offsets = [0, 0], sizes = [8, 8], strides = [1, 1]} : vector<8x9xf32> to vector<8x8xf32>
    %209 = tpu.reciprocal %207 : vector<8x1xf32> -> vector<8x1xf32>
    %210 = vector.broadcast %209 : vector<8x1xf32> to vector<8x8xf32>
    %211 = arith.mulf %208, %210 : vector<8x8xf32>
    %cst_41 = arith.constant 0.000000e+00 : f32
    %212 = vector.broadcast %cst_41 : f32 to vector<8x64xf32>
    %213 = tpu.concatenate %43, %67, %91, %115, %139, %163, %187, %211, %212 in 1 : vector<8x8xf32>, vector<8x8xf32>, vector<8x8xf32>, vector<8x8xf32>, vector<8x8xf32>, vector<8x8xf32>, vector<8x8xf32>, vector<8x8xf32>, vector<8x64xf32> -> vector<8x128xf32>
    %c0_42 = arith.constant 0 : index
    %c0_43 = arith.constant 0 : index
    %214 = vector.load %arg7[%c0_42, %c0_43] : memref<1x128xf32, #tpu.memory_space<vmem>>, vector<1x128xf32>
    %215 = vector.broadcast %214 : vector<1x128xf32> to vector<8x128xf32>
    %216 = arith.addf %213, %215 : vector<8x128xf32>
    %c0_44 = arith.constant 0 : index
    %c0_45 = arith.constant 0 : index
    %217 = vector.load %arg8[%c0_44, %c0_45] : memref<8x128xf32, #tpu.memory_space<vmem>>, vector<8x128xf32>
    tpu.vector_store %arg8[%c0_44, %c0_45], %216 {strides = array<i32>} : memref<8x128xf32, #tpu.memory_space<vmem>>, vector<8x128xf32>,
    return
  }
  func.func @transform_0(%arg0: i32) -> (i32, i32) {
    %c0_i32 = arith.constant 0 : i32
    %c0_i32_0 = arith.constant 0 : i32
    %c0_i32_1 = arith.constant 0 : i32
    return %c0_i32, %c0_i32_0 : i32, i32
  }
  func.func @transform_1(%arg0: i32) -> (i32, i32) {
    %c0_i32 = arith.constant 0 : i32
    %c0_i32_0 = arith.constant 0 : i32
    return %arg0, %c0_i32 : i32, i32
  }
  func.func @transform_2(%arg0: i32) -> (i32, i32) {
    %c0_i32 = arith.constant 0 : i32
    %c0_i32_0 = arith.constant 0 : i32
    %c0_i32_1 = arith.constant 0 : i32
    return %c0_i32, %c0_i32_0 : i32, i32
  }
  func.func @transform_3(%arg0: i32) -> (i32, i32) {
    %c0_i32 = arith.constant 0 : i32
    %c0_i32_0 = arith.constant 0 : i32
    %c0_i32_1 = arith.constant 0 : i32
    return %c0_i32, %c0_i32_0 : i32, i32
  }
  func.func @transform_4(%arg0: i32) -> (i32, i32) {
    %c0_i32 = arith.constant 0 : i32
    %c0_i32_0 = arith.constant 0 : i32
    %c0_i32_1 = arith.constant 0 : i32
    return %c0_i32, %c0_i32_0 : i32, i32
  }
  func.func @transform_5(%arg0: i32) -> (i32, i32) {
    %c0_i32 = arith.constant 0 : i32
    %c0_i32_0 = arith.constant 0 : i32
    return %arg0, %c0_i32 : i32, i32
  }
  func.func @transform_6(%arg0: i32) -> (i32, i32) {
    %c0_i32 = arith.constant 0 : i32
    %c0_i32_0 = arith.constant 0 : i32
    %c0_i32_1 = arith.constant 0 : i32
    return %c0_i32, %c0_i32_0 : i32, i32
  }
  func.func @transform_7(%arg0: i32) -> (i32, i32) {
    %c0_i32 = arith.constant 0 : i32
    %c0_i32_0 = arith.constant 0 : i32
    return %arg0, %c0_i32 : i32, i32
  }
}

</mosaic_0001>

<llo_original>
// kernel: tpu_custom_call.1
$region0: #{tpu_custom_call.1}
  #allocation0 [shape = 'u32[]', space=smem, size = 0x4, offset = 0x4, fixed_abs, tag = 'smem constant byte address 0x4 - core index']
  #allocation1 [shape = 'u32[144,128]{1,0:T(1,128)}', space=vmem, size = 0x12000, scoped, tag = 'internal scratch']
  %s0 = inlined_call_operand.hbm [shape: f32[16,16], index: 0, kind: input, shape index: {}]
  %s1 = inlined_call_operand.hbm [shape: f32[16,16], index: 1, kind: input, shape index: {}]
  %s2 = inlined_call_operand.hbm [shape: f32[16,64], index: 2, kind: input, shape index: {}]
  %s3 = inlined_call_operand.hbm [shape: f32[16,8], index: 3, kind: input, shape index: {}]
  %s4 = inlined_call_operand.hbm [shape: f32[16,8], index: 4, kind: input, shape index: {}]
  %s5 = inlined_call_operand.hbm [shape: bf16[16,16], index: 5, kind: input, shape index: {}]
  %s6 = inlined_call_operand.hbm [shape: f32[1,128], index: 6, kind: input, shape index: {}]
  %s7 = inlined_call_operand.hbm [shape: f32[16,128], index: 7, kind: output, shape index: {}]
  %s8 = sld [smem:[#allocation0]]
  $region89: #{tpu_custom_call.1} parent=0
    _
  %s10 = ssub.s32 1, %s8
  %s11 = scalar_select 0, %s10, %s8
  $region1: #{tpu_custom_call.1} parent=0
    #allocation2 [shape = 'u8[8192]{0}', space=vmem, size = 0x2000, scoped, tag = 'input window, operand 0, single buffered']
    #allocation3 [shape = 's32[2]{0}', space=sflag, size = 0x8, scoped, tag = 'scoped memory for tpu_custom_call.1']
    #allocation4 [shape = 's32[2]{0}', space=sflag, size = 0x8, scoped, tag = 'scoped memory for tpu_custom_call.1']
    #allocation5 [shape = 'u8[8192]{0}', space=vmem, size = 0x2000, scoped, tag = 'input window, operand 1']
    #allocation6 [shape = 's32[2]{0}', space=sflag, size = 0x8, scoped, tag = 'scoped memory for tpu_custom_call.1']
    #allocation7 [shape = 'u8[8192]{0}', space=vmem, size = 0x2000, scoped, tag = 'input window, operand 2, single buffered']
    #allocation8 [shape = 'u8[8192]{0}', space=vmem, size = 0x2000, scoped, tag = 'input window, operand 3, single buffered']
    #allocation9 [shape = 's32[1]{0}', space=sflag, size = 0x4, scoped, tag = 'scoped memory for tpu_custom_call.1']
    #allocation10 [shape = 'u8[8192]{0}', space=vmem, size = 0x2000, scoped, tag = 'input window, operand 4, single buffered']
    #allocation11 [shape = 'u8[4096]{0}', space=vmem, size = 0x1000, scoped, tag = 'input window, operand 5']
    #allocation12 [shape = 's32[2]{0}', space=sflag, size = 0x8, scoped, tag = 'scoped memory for tpu_custom_call.1']
    #allocation13 [shape = 'u8[512]{0}', space=vmem, size = 0x400, scoped, tag = 'input window, operand 6, single buffered']
    #allocation14 [shape = 'u8[8192]{0}', space=vmem, size = 0x2000, scoped, tag = 'output window, operand 0']
    %12 = vsyncpa [#allocation3], 0
    %13 = vsyncpa [#allocation6], 0
    %s14 = scalar_lea.sflag [#allocation6], 1
    %15 = vsyncpa %s14, 0
    %16 = vsyncpa [#allocation9], 0
    %17 = vsyncpa [#allocation12], 0
    %s18 = scalar_lea.sflag [#allocation12], 1
    %19 = vsyncpa %s18, 0
    %20 = vsyncpa [#allocation4], 0
    %s21 = scalar_lea.sflag [#allocation4], 1
    %22 = vsyncpa %s21, 0
    loop: start=0, step=1, limit=4
    $region2: #{tpu_custom_call.1} parent=1 // loop_pre_header
      _
    $region3: #{tpu_custom_call.1} parent=1 // loop_header
      %s24 = sphi 0, %s28
      %p25 = scmp.ge.s32.totalorder %s24, 4
      %s32 = sphi 0, %s32
      %s34 = sphi 0, %s32
      %s35 = sphi 0, %s34
      %s49 = sphi 0, %s35
      %s55 = sphi 0, %s57
      %s58 = sphi 0, %s55
      %s59 = sphi 0, %s58
      %s75 = sphi 0, %s59
      %s79 = sphi 0, %s79
      %s81 = sphi 0, %s79
      %s82 = sphi 0, %s81
      %s96 = sphi 0, %s82
      %s100 = sphi 0, %s100
      %s102 = sphi 0, %s100
      %s103 = sphi 0, %s102
      %s117 = sphi 0, %s103
      %s121 = sphi 0, %s121
      %s123 = sphi 0, %s121
      %s124 = sphi 0, %s123
      %s138 = sphi 0, %s124
      %s144 = sphi 0, %s146
      %s147 = sphi 0, %s144
      %s148 = sphi 0, %s147
      %s164 = sphi 0, %s148
      %s168 = sphi 0, %s168
      %s170 = sphi 0, %s168
      %s171 = sphi 0, %s170
      %s185 = sphi 0, %s171
      %s191 = sphi 0, %s193
      %s194 = sphi 0, %s191
      %s195 = sphi 0, %s194
      %s211 = sphi 0, %s195
    $region4: #{tpu_custom_call.1} parent=1 // loop_header_branch
      %27 = sbr.rel (%p25) target = $region8
    $region5: #{tpu_custom_call.1} parent=1 // loop_body
      %s29 = ssub.s32 %s24, 1
      %s30 = ssub.s32 %s24, 2
      %s31 = sadd.s32 %s24, 1
      %s33 = sadd.s32 %s32, 1
      %p36 = scmp.eq.s32.totalorder %s24, 1
      %p37 = scmp.ne.s32.totalorder %s32, %s34
      %p38 = scmp.eq.s32.totalorder %s24, 0
      %p39 = por %p37, %p38
      %p40 = scmp.ne.s32.totalorder %s32, %s34
      %p41 = scmp.eq.s32.totalorder %s29, 1
      %p42 = por %p40, %p41
      %p43 = scmp.ne.s32.totalorder %s34, %s35
      %p44 = scmp.eq.s32.totalorder %s29, 0
      %p45 = por %p43, %p44
      %p46 = scmp.ne.s32.totalorder %s34, %s35
      %p47 = scmp.eq.s32.totalorder %s30, 1
      %p48 = por %p46, %p47
      %p50 = scmp.ne.s32.totalorder %s35, %s49
      %p51 = scmp.eq.s32.totalorder %s30, 0
      %p52 = por %p50, %p51
      %s53 = ssub.s32 %s24, %s31
      %p54 = scmp.eq.s32.totalorder %s53, 0
      %s56 = sadd.s32 %s55, 1
      %s57 = scalar_select %p54, %s55, %s56
      %p60 = pneg %p54
      %p61 = scmp.eq.s32.totalorder %s24, 1
      %p62 = por %p60, %p61
      %p63 = scmp.ne.s32.totalorder %s55, %s58
      %p64 = scmp.eq.s32.totalorder %s24, 0
      %p65 = por %p63, %p64
      %p66 = scmp.ne.s32.totalorder %s55, %s58
      %p67 = scmp.eq.s32.totalorder %s29, 1
      %p68 = por %p66, %p67
      %p69 = scmp.ne.s32.totalorder %s58, %s59
      %p70 = scmp.eq.s32.totalorder %s29, 0
      %p71 = por %p69, %p70
      %p72 = scmp.ne.s32.totalorder %s58, %s59
      %p73 = scmp.eq.s32.totalorder %s30, 1
      %p74 = por %p72, %p73
      %p76 = scmp.ne.s32.totalorder %s59, %s75
      %p77 = scmp.eq.s32.totalorder %s30, 0
      %p78 = por %p76, %p77
      %s80 = sadd.s32 %s79, 1
      %p83 = scmp.eq.s32.totalorder %s24, 1
      %p84 = scmp.ne.s32.totalorder %s79, %s81
      %p85 = scmp.eq.s32.totalorder %s24, 0
      %p86 = por %p84, %p85
      %p87 = scmp.ne.s32.totalorder %s79, %s81
      %p88 = scmp.eq.s32.totalorder %s29, 1
      %p89 = por %p87, %p88
      %p90 = scmp.ne.s32.totalorder %s81, %s82
      %p91 = scmp.eq.s32.totalorder %s29, 0
      %p92 = por %p90, %p91
      %p93 = scmp.ne.s32.totalorder %s81, %s82
      %p94 = scmp.eq.s32.totalorder %s30, 1
      %p95 = por %p93, %p94
      %p97 = scmp.ne.s32.totalorder %s82, %s96
      %p98 = scmp.eq.s32.totalorder %s30, 0
      %p99 = por %p97, %p98
      %s101 = sadd.s32 %s100, 1
      %p104 = scmp.eq.s32.totalorder %s24, 1
      %p105 = scmp.ne.s32.totalorder %s100, %s102
      %p106 = scmp.eq.s32.totalorder %s24, 0
      %p107 = por %p105, %p106
      %p108 = scmp.ne.s32.totalorder %s100, %s102
      %p109 = scmp.eq.s32.totalorder %s29, 1
      %p110 = por %p108, %p109
      %p111 = scmp.ne.s32.totalorder %s102, %s103
      %p112 = scmp.eq.s32.totalorder %s29, 0
      %p113 = por %p111, %p112
      %p114 = scmp.ne.s32.totalorder %s102, %s103
      %p115 = scmp.eq.s32.totalorder %s30, 1
      %p116 = por %p114, %p115
      %p118 = scmp.ne.s32.totalorder %s103, %s117
      %p119 = scmp.eq.s32.totalorder %s30, 0
      %p120 = por %p118, %p119
      %s122 = sadd.s32 %s121, 1
      %p125 = scmp.eq.s32.totalorder %s24, 1
      %p126 = scmp.ne.s32.totalorder %s121, %s123
      %p127 = scmp.eq.s32.totalorder %s24, 0
      %p128 = por %p126, %p127
      %p129 = scmp.ne.s32.totalorder %s121, %s123
      %p130 = scmp.eq.s32.totalorder %s29, 1
      %p131 = por %p129, %p130
      %p132 = scmp.ne.s32.totalorder %s123, %s124
      %p133 = scmp.eq.s32.totalorder %s29, 0
      %p134 = por %p132, %p133
      %p135 = scmp.ne.s32.totalorder %s123, %s124
      %p136 = scmp.eq.s32.totalorder %s30, 1
      %p137 = por %p135, %p136
      %p139 = scmp.ne.s32.totalorder %s124, %s138
      %p140 = scmp.eq.s32.totalorder %s30, 0
      %p141 = por %p139, %p140
      %s142 = ssub.s32 %s24, %s31
      %p143 = scmp.eq.s32.totalorder %s142, 0
      %s145 = sadd.s32 %s144, 1
      %s146 = scalar_select %p143, %s144, %s145
      %p149 = pneg %p143
      %p150 = scmp.eq.s32.totalorder %s24, 1
      %p151 = por %p149, %p150
      %p152 = scmp.ne.s32.totalorder %s144, %s147
      %p153 = scmp.eq.s32.totalorder %s24, 0
      %p154 = por %p152, %p153
      %p155 = scmp.ne.s32.totalorder %s144, %s147
      %p156 = scmp.eq.s32.totalorder %s29, 1
      %p157 = por %p155, %p156
      %p158 = scmp.ne.s32.totalorder %s147, %s148
      %p159 = scmp.eq.s32.totalorder %s29, 0
      %p160 = por %p158, %p159
      %p161 = scmp.ne.s32.totalorder %s147, %s148
      %p162 = scmp.eq.s32.totalorder %s30, 1
      %p163 = por %p161, %p162
      %p165 = scmp.ne.s32.totalorder %s148, %s164
      %p166 = scmp.eq.s32.totalorder %s30, 0
      %p167 = por %p165, %p166
      %s169 = sadd.s32 %s168, 1
      %p172 = scmp.eq.s32.totalorder %s24, 1
      %p173 = scmp.ne.s32.totalorder %s168, %s170
      %p174 = scmp.eq.s32.totalorder %s24, 0
      %p175 = por %p173, %p174
      %p176 = scmp.ne.s32.totalorder %s168, %s170
      %p177 = scmp.eq.s32.totalorder %s29, 1
      %p178 = por %p176, %p177
      %p179 = scmp.ne.s32.totalorder %s170, %s171
      %p180 = scmp.eq.s32.totalorder %s29, 0
      %p181 = por %p179, %p180
      %p182 = scmp.ne.s32.totalorder %s170, %s171
      %p183 = scmp.eq.s32.totalorder %s30, 1
      %p184 = por %p182, %p183
      %p186 = scmp.ne.s32.totalorder %s171, %s185
      %p187 = scmp.eq.s32.totalorder %s30, 0
      %p188 = por %p186, %p187
      %s189 = ssub.s32 %s24, %s31
      %p190 = scmp.eq.s32.totalorder %s189, 0
      %s192 = sadd.s32 %s191, 1
      %s193 = scalar_select %p190, %s191, %s192
      %p196 = pneg %p190
      %p197 = scmp.eq.s32.totalorder %s24, 1
      %p198 = por %p196, %p197
      %p199 = scmp.ne.s32.totalorder %s191, %s194
      %p200 = scmp.eq.s32.totalorder %s24, 0
      %p201 = por %p199, %p200
      %p202 = scmp.ne.s32.totalorder %s191, %s194
      %p203 = scmp.eq.s32.totalorder %s29, 1
      %p204 = por %p202, %p203
      %p205 = scmp.ne.s32.totalorder %s194, %s195
      %p206 = scmp.eq.s32.totalorder %s29, 0
      %p207 = por %p205, %p206
      %p208 = scmp.ne.s32.totalorder %s194, %s195
      %p209 = scmp.eq.s32.totalorder %s30, 1
      %p210 = por %p208, %p209
      %p212 = scmp.ne.s32.totalorder %s195, %s211
      %p213 = scmp.eq.s32.totalorder %s30, 0
      %p214 = por %p212, %p213
      %p215 = scmp.le.s32.totalorder 1, %s24
      %p216 = scmp.lt.s32.totalorder %s24, 3
      %p217 = pnand %p215, %p216
      %p218 = pneg %p217
      // Predicated region
      $region9: #{tpu_custom_call.1} parent=5 // pred_check
        _
      $region10: #{tpu_custom_call.1} parent=5 // pred_check_branch
        %220 = sbr.rel (%p217) target = $region12
      $region11: #{tpu_custom_call.1} parent=5 // pred_region
        %s221 = ssub.s32 %s24, 1
        // Predicated region
        $region13: #{tpu_custom_call.1} parent=11 // pred_check
          %p222 = pneg %p45
        $region14: #{tpu_custom_call.1} parent=11 // pred_check_branch
          %224 = sbr.rel (%p222) target = $region16
        $region15: #{tpu_custom_call.1} parent=11 // pred_region
          %s226 = ssub.s32 256, 256
          %227 = vsyncadd [#allocation3], %s226
          %s228 = sshll.u32 [#allocation2], 4
          %s229 = int_to_ptr.vmem [resolvable:$true] %s228
          %234 = dma.hbm_to_vmem [thread:$0]  %s0, 256, %s229, [#allocation3], 128, 128, 8
        $region16: #{tpu_custom_call.1} parent=11 // pred_fallthru
          _
        // Predicated region
        $region17: #{tpu_custom_call.1} parent=11 // pred_check
          %p235 = pneg %p92
        $region18: #{tpu_custom_call.1} parent=11 // pred_check_branch
          %237 = sbr.rel (%p235) target = $region20
        $region19: #{tpu_custom_call.1} parent=11 // pred_region
          %s239 = ssub.s32 256, 256
          %240 = vsyncadd [#allocation6], %s239
          %s241 = sshll.u32 [#allocation7], 4
          %s242 = int_to_ptr.vmem [resolvable:$true] %s241
          %247 = dma.hbm_to_vmem [thread:$0]  %s2, 256, %s242, [#allocation6], 128, 128, 8
        $region20: #{tpu_custom_call.1} parent=11 // pred_fallthru
          _
        // Predicated region
        $region21: #{tpu_custom_call.1} parent=11 // pred_check
          %p248 = pneg %p113
        $region22: #{tpu_custom_call.1} parent=11 // pred_check_branch
          %250 = sbr.rel (%p248) target = $region24
        $region23: #{tpu_custom_call.1} parent=11 // pred_region
          %s252 = ssub.s32 256, 256
          %253 = vsyncadd [#allocation9], %s252
          %s254 = sshll.u32 [#allocation8], 4
          %s255 = int_to_ptr.vmem [resolvable:$true] %s254
          %260 = dma.hbm_to_vmem [thread:$0]  %s3, 256, %s255, [#allocation9], 128, 128, 8
        $region24: #{tpu_custom_call.1} parent=11 // pred_fallthru
          _
        // Predicated region
        $region25: #{tpu_custom_call.1} parent=11 // pred_check
          %p261 = pneg %p134
        $region26: #{tpu_custom_call.1} parent=11 // pred_check_branch
          %263 = sbr.rel (%p261) target = $region28
        $region27: #{tpu_custom_call.1} parent=11 // pred_region
          %s265 = ssub.s32 256, 256
          %266 = vsyncadd [#allocation9], %s265
          %s267 = sshll.u32 [#allocation10], 4
          %s268 = int_to_ptr.vmem [resolvable:$true] %s267
          %273 = dma.hbm_to_vmem [thread:$0]  %s4, 256, %s268, [#allocation9], 128, 128, 8
        $region28: #{tpu_custom_call.1} parent=11 // pred_fallthru
          _
        // Predicated region
        $region29: #{tpu_custom_call.1} parent=11 // pred_check
          %p274 = pneg %p181
        $region30: #{tpu_custom_call.1} parent=11 // pred_check_branch
          %276 = sbr.rel (%p274) target = $region32
        $region31: #{tpu_custom_call.1} parent=11 // pred_region
          %s278 = ssub.s32 16, 16
          %279 = vsyncadd [#allocation12], %s278
          %s281 = sshll.u32 [#allocation13], 4
          %s282 = int_to_ptr.vmem [resolvable:$true] %s281
          %284 = dma.hbm_to_vmem [thread:$0]  %s6, 16, %s282, [#allocation12]
        $region32: #{tpu_custom_call.1} parent=11 // pred_fallthru
          _
      $region12: #{tpu_custom_call.1} parent=5 // pred_fallthru
        _
      %p285 = scmp.lt.s32.totalorder %s24, 2
      // Predicated region
      $region33: #{tpu_custom_call.1} parent=5 // pred_check
        %p286 = pneg %p285
      $region34: #{tpu_custom_call.1} parent=5 // pred_check_branch
        %288 = sbr.rel (%p286) target = $region36
      $region35: #{tpu_custom_call.1} parent=5 // pred_region
        // Predicated region
        $region37: #{tpu_custom_call.1} parent=35 // pred_check
          %p289 = pneg %p65
        $region38: #{tpu_custom_call.1} parent=35 // pred_check_branch
          %291 = sbr.rel (%p289) target = $region40
        $region39: #{tpu_custom_call.1} parent=35 // pred_region
          %s292 = sand.u32 %s24, 1
          %s293 = scalar_lea.sflag [#allocation6], %s292
          %s294 = sand.u32 %s55, 1
          %s295 = smul.addr %s294, 8
          %s296 = scalar_lea.vmem [#allocation5], %s295
          %s298 = ssub.s32 128, 128
          %299 = vsyncadd %s293, %s298
          %s300 = smul.addr %s24, 128
          %s301 = scalar_lea.hbm %s1, %s300
          %s303 = sshll.u32 %s296, 4
          %s304 = int_to_ptr.vmem [resolvable:$true] %s303
          %306 = dma.hbm_to_vmem [thread:$0]  %s301, 128, %s304, %s293
        $region40: #{tpu_custom_call.1} parent=35 // pred_fallthru
          _
        // Predicated region
        $region41: #{tpu_custom_call.1} parent=35 // pred_check
          %p307 = pneg %p154
        $region42: #{tpu_custom_call.1} parent=35 // pred_check_branch
          %309 = sbr.rel (%p307) target = $region44
        $region43: #{tpu_custom_call.1} parent=35 // pred_region
          %s310 = sand.u32 %s24, 1
          %s311 = scalar_lea.sflag [#allocation12], %s310
          %s312 = sand.u32 %s144, 1
          %s313 = smul.addr %s312, 4
          %s314 = scalar_lea.vmem [#allocation11], %s313
          %s316 = ssub.s32 64, 64
          %317 = vsyncadd %s311, %s316
          %s318 = smul.addr %s24, 64
          %s319 = scalar_lea.hbm %s5, %s318
          %s321 = sshll.u32 %s314, 4
          %s322 = int_to_ptr.vmem [resolvable:$true] %s321
          %324 = dma.hbm_to_vmem [thread:$0]  %s319, 64, %s322, %s311
        $region44: #{tpu_custom_call.1} parent=35 // pred_fallthru
          _
      $region36: #{tpu_custom_call.1} parent=5 // pred_fallthru
        _
      %p325 = scmp.le.s32.totalorder 1, %s24
      %p326 = scmp.lt.s32.totalorder %s24, 3
      %p327 = pnand %p325, %p326
      %p328 = pneg %p327
      // Predicated region
      $region45: #{tpu_custom_call.1} parent=5 // pred_check
        _
      $region46: #{tpu_custom_call.1} parent=5 // pred_check_branch
        %330 = sbr.rel (%p327) target = $region48
      $region47: #{tpu_custom_call.1} parent=5 // pred_region
        %s331 = ssub.s32 %s24, 1
        // Predicated region
        $region49: #{tpu_custom_call.1} parent=47 // pred_check
          %p332 = pneg %p45
        $region50: #{tpu_custom_call.1} parent=47 // pred_check_branch
          %334 = sbr.rel (%p332) target = $region52
        $region51: #{tpu_custom_call.1} parent=47 // pred_region
          %335 = dma.done [#allocation3], 256
        $region52: #{tpu_custom_call.1} parent=47 // pred_fallthru
          _
        %s336 = sand.u32 %s29, 1
        %s337 = scalar_lea.sflag [#allocation6], %s336
        %s338 = sand.u32 %s58, 1
        %s339 = smul.addr %s338, 8
        %s340 = scalar_lea.vmem [#allocation5], %s339
        // Predicated region
        $region53: #{tpu_custom_call.1} parent=47 // pred_check
          %p341 = pneg %p71
        $region54: #{tpu_custom_call.1} parent=47 // pred_check_branch
          %343 = sbr.rel (%p341) target = $region56
        $region55: #{tpu_custom_call.1} parent=47 // pred_region
          %344 = dma.done %s337, 128
        $region56: #{tpu_custom_call.1} parent=47 // pred_fallthru
          _
        // Predicated region
        $region57: #{tpu_custom_call.1} parent=47 // pred_check
          %p345 = pneg %p92
        $region58: #{tpu_custom_call.1} parent=47 // pred_check_branch
          %347 = sbr.rel (%p345) target = $region60
        $region59: #{tpu_custom_call.1} parent=47 // pred_region
          %348 = dma.done [#allocation6], 256
        $region60: #{tpu_custom_call.1} parent=47 // pred_fallthru
          _
        // Predicated region
        $region61: #{tpu_custom_call.1} parent=47 // pred_check
          %p349 = pneg %p113
        $region62: #{tpu_custom_call.1} parent=47 // pred_check_branch
          %351 = sbr.rel (%p349) target = $region64
        $region63: #{tpu_custom_call.1} parent=47 // pred_region
          %352 = dma.done [#allocation9], 256
        $region64: #{tpu_custom_call.1} parent=47 // pred_fallthru
          _
        // Predicated region
        $region65: #{tpu_custom_call.1} parent=47 // pred_check
          %p353 = pneg %p134
        $region66: #{tpu_custom_call.1} parent=47 // pred_check_branch
          %355 = sbr.rel (%p353) target = $region68
        $region67: #{tpu_custom_call.1} parent=47 // pred_region
          %356 = dma.done [#allocation9], 256
        $region68: #{tpu_custom_call.1} parent=47 // pred_fallthru
          _
        %s357 = sand.u32 %s29, 1
        %s358 = scalar_lea.sflag [#allocation12], %s357
        %s359 = sand.u32 %s147, 1
        %s360 = smul.addr %s359, 4
        %s361 = scalar_lea.vmem [#allocation11], %s360
        // Predicated region
        $region69: #{tpu_custom_call.1} parent=47 // pred_check
          %p362 = pneg %p160
        $region70: #{tpu_custom_call.1} parent=47 // pred_check_branch
          %364 = sbr.rel (%p362) target = $region72
        $region71: #{tpu_custom_call.1} parent=47 // pred_region
          %365 = dma.done %s358, 64
        $region72: #{tpu_custom_call.1} parent=47 // pred_fallthru
          _
        // Predicated region
        $region73: #{tpu_custom_call.1} parent=47 // pred_check
          %p366 = pneg %p181
        $region74: #{tpu_custom_call.1} parent=47 // pred_check_branch
          %368 = sbr.rel (%p366) target = $region76
        $region75: #{tpu_custom_call.1} parent=47 // pred_region
          %369 = dma.done [#allocation12], 16
        $region76: #{tpu_custom_call.1} parent=47 // pred_fallthru
          _
        %p370 = pneg %p45
        %p371 = pneg %p42
        %s372 = sand.u32 %s29, 1
        %s373 = scalar_lea.sflag [#allocation6], %s372
        %s374 = sand.u32 %s58, 1
        %s375 = smul.addr %s374, 8
        %s376 = scalar_lea.vmem [#allocation5], %s375
        %p377 = pneg %p71
        %p378 = pneg %p68
        %p379 = pneg %p92
        %p380 = pneg %p89
        %p381 = pneg %p113
        %p382 = pneg %p110
        %p383 = pneg %p134
        %p384 = pneg %p131
        %s385 = sand.u32 %s29, 1
        %s386 = scalar_lea.sflag [#allocation12], %s385
        %s387 = sand.u32 %s147, 1
        %s388 = smul.addr %s387, 4
        %s389 = scalar_lea.vmem [#allocation11], %s388
        %p390 = pneg %p160
        %p391 = pneg %p157
        %p392 = pneg %p181
        %p393 = pneg %p178
        %p394 = pneg %p207
        %p395 = pneg %p204
        %s396 = sand.u32 %s194, 1
        %s397 = scalar_lea.sflag [#allocation4], %s396
        %s398 = sand.u32 %s194, 1
        %s399 = smul.addr %s398, 8
        %s400 = scalar_lea.vmem [#allocation14], %s399
        %v401 = vld [vmem:[#allocation2] sm:$0xff]
        %v402 = vld [vmem:[#allocation2 + $0x8] sm:$0xff]
        %v403 = vld [vmem:[#allocation7] sm:$0xff]
        %v404 = vld [vmem:[#allocation7 + $0x8] sm:$0xff]
        %vm405 = vcmask 130048
        %v407 = vsel %vm405, %v401, 0
        %v410 = vsel %vm405, %v402, 0
        %412 = vmatprep.subr.mxu0 0.0
        %413 = vmatpush1.msra.mxu0 %v403
        %414 = vmatprep.subr.mxu0 0.0
        %415 = vmatpush1.msra.mxu0 %v404
        %416 = vmatprep.subr.mxu0 0.0
        %417 = vmatpush1.msra.mxu0 0.0
        %418 = vmatprep.subr.mxu0 0.0
        %419 = vmatpush1.msra.mxu0 0.0
        %420 = vmatprep.subr.mxu0 0.0
        %421 = vmatpush1.msra.mxu0 0.0
        %422 = vmatprep.subr.mxu0 0.0
        %423 = vmatpush1.msra.mxu0 0.0
        %424 = vmatprep.subr.mxu0 0.0
        %425 = vmatpush1.msra.mxu0 0.0
        %426 = vmatprep.subr.mxu0 0.0
        %427 = vmatpush1.msra.mxu0 0.0
        %428 = vmatprep.subr.mxu0 0.0
        %429 = vmatpush1.msra.mxu0 0.0
        %430 = vmatprep.subr.mxu0 0.0
        %431 = vmatpush1.msra.mxu0 0.0
        %432 = vmatprep.subr.mxu0 0.0
        %433 = vmatpush1.msra.mxu0 0.0
        %434 = vmatprep.subr.mxu0 0.0
        %435 = vmatpush1.msra.mxu0 0.0
        %436 = vmatprep.subr.mxu0 0.0
        %437 = vmatpush1.msra.mxu0 0.0
        %438 = vmatprep.subr.mxu0 0.0
        %439 = vmatpush1.msra.mxu0 0.0
        %440 = vmatprep.subr.mxu0 0.0
        %441 = vmatpush1.msra.mxu0 0.0
        %442 = vmatprep.subr.mxu0 0.0
        %443 = vmatpush1.msra.mxu0 0.0
        %444 = vmatprep.subr.mxu0 0.0
        %445 = vmatpush1.msra.mxu0 0.0
        %446 = vmatprep.subr.mxu0 0.0
        %447 = vmatpush1.msra.mxu0 0.0
        %448 = vmatprep.subr.mxu0 0.0
        %449 = vmatpush1.msra.mxu0 0.0
        %450 = vmatprep.subr.mxu0 0.0
        %451 = vmatpush1.msra.mxu0 0.0
        %452 = vmatprep.subr.mxu0 0.0
        %453 = vmatpush1.msra.mxu0 0.0
        %454 = vmatprep.subr.mxu0 0.0
        %455 = vmatpush1.msra.mxu0 0.0
        %456 = vmatprep.subr.mxu0 0.0
        %457 = vmatpush1.msra.mxu0 0.0
        %458 = vmatprep.subr.mxu0 0.0
        %459 = vmatpush1.msra.mxu0 0.0
        %460 = vmatprep.subr.mxu0 0.0
        %461 = vmatpush1.msra.mxu0 0.0
        %462 = vmatprep.subr.mxu0 0.0
        %463 = vmatpush1.msra.mxu0 0.0
        %464 = vmatprep.subr.mxu0 0.0
        %465 = vmatpush1.msra.mxu0 0.0
        %466 = vmatprep.subr.mxu0 0.0
        %467 = vmatpush1.msra.mxu0 0.0
        %468 = vmatprep.subr.mxu0 0.0
        %469 = vmatpush1.msra.mxu0 0.0
        %470 = vmatprep.subr.mxu0 0.0
        %471 = vmatpush1.msra.mxu0 0.0
        %472 = vmatprep.subr.mxu0 0.0
        %473 = vmatpush1.msra.mxu0 0.0
        %474 = vmatprep.subr.mxu0 0.0
        %475 = vmatpush1.msra.mxu0 0.0
        %476 = vmatprep.mubr.f32.mxu0 0.0
        %477 = vmatmul.mubr.f32.gmra.mrb[0].mxu0 %v407
        %v478 = vpop.f32.mrb[0].mxu0
        %v479 = vadd.f32 0.0, %v478
        %v480 = vpop.f32.mrb[0].mxu0
        %481 = vmatprep.mubr.f32.mxu0 0.0
        %482 = vmatmul.mubr.f32.gmra.mrb[0].mxu0 %v410
        %v483 = vpop.f32.mrb[0].mxu0
        %v484 = vadd.f32 0.0, %v483
        %v485 = vpop.f32.mrb[0].mxu0
        %486 = vdwg.mxu0
        %v487 = vld [vmem:[#allocation8] sm:$0xff]
        %v488 = vld [vmem:[#allocation8 + $0x8] sm:$0xff]
        %489 = vmatprep.subr.mxu0 0.0
        %490 = vmatpush1.msra.mxu0 %v487
        %491 = vmatprep.subr.mxu0 0.0
        %492 = vmatpush1.msra.mxu0 %v488
        %493 = vmatprep.subr.mxu0 0.0
        %494 = vmatpush1.msra.mxu0 0.0
        %495 = vmatprep.subr.mxu0 0.0
        %496 = vmatpush1.msra.mxu0 0.0
        %497 = vmatprep.subr.mxu0 0.0
        %498 = vmatpush1.msra.mxu0 0.0
        %499 = vmatprep.subr.mxu0 0.0
        %500 = vmatpush1.msra.mxu0 0.0
        %501 = vmatprep.subr.mxu0 0.0
        %502 = vmatpush1.msra.mxu0 0.0
        %503 = vmatprep.subr.mxu0 0.0
        %504 = vmatpush1.msra.mxu0 0.0
        %505 = vmatprep.subr.mxu0 0.0
        %506 = vmatpush1.msra.mxu0 0.0
        %507 = vmatprep.subr.mxu0 0.0
        %508 = vmatpush1.msra.mxu0 0.0
        %509 = vmatprep.subr.mxu0 0.0
        %510 = vmatpush1.msra.mxu0 0.0
        %511 = vmatprep.subr.mxu0 0.0
        %512 = vmatpush1.msra.mxu0 0.0
        %513 = vmatprep.subr.mxu0 0.0
        %514 = vmatpush1.msra.mxu0 0.0
        %515 = vmatprep.subr.mxu0 0.0
        %516 = vmatpush1.msra.mxu0 0.0
        %517 = vmatprep.subr.mxu0 0.0
        %518 = vmatpush1.msra.mxu0 0.0
        %519 = vmatprep.subr.mxu0 0.0
        %520 = vmatpush1.msra.mxu0 0.0
        %521 = vmatprep.subr.mxu0 0.0
        %522 = vmatpush1.msra.mxu0 0.0
        %523 = vmatprep.subr.mxu0 0.0
        %524 = vmatpush1.msra.mxu0 0.0
        %525 = vmatprep.subr.mxu0 0.0
        %526 = vmatpush1.msra.mxu0 0.0
        %527 = vmatprep.subr.mxu0 0.0
        %528 = vmatpush1.msra.mxu0 0.0
        %529 = vmatprep.subr.mxu0 0.0
        %530 = vmatpush1.msra.mxu0 0.0
        %531 = vmatprep.subr.mxu0 0.0
        %532 = vmatpush1.msra.mxu0 0.0
        %533 = vmatprep.subr.mxu0 0.0
        %534 = vmatpush1.msra.mxu0 0.0
        %535 = vmatprep.subr.mxu0 0.0
        %536 = vmatpush1.msra.mxu0 0.0
        %537 = vmatprep.subr.mxu0 0.0
        %538 = vmatpush1.msra.mxu0 0.0
        %539 = vmatprep.subr.mxu0 0.0
        %540 = vmatpush1.msra.mxu0 0.0
        %541 = vmatprep.subr.mxu0 0.0
        %542 = vmatpush1.msra.mxu0 0.0
        %543 = vmatprep.subr.mxu0 0.0
        %544 = vmatpush1.msra.mxu0 0.0
        %545 = vmatprep.subr.mxu0 0.0
        %546 = vmatpush1.msra.mxu0 0.0
        %547 = vmatprep.subr.mxu0 0.0
        %548 = vmatpush1.msra.mxu0 0.0
        %549 = vmatprep.subr.mxu0 0.0
        %550 = vmatpush1.msra.mxu0 0.0
        %551 = vmatprep.subr.mxu0 0.0
        %552 = vmatpush1.msra.mxu0 0.0
        %553 = vmatprep.mubr.f32.mxu0 0.0
        %554 = vmatmul.mubr.f32.gmra.mrb[0].mxu0 %v407
        %v555 = vpop.f32.mrb[0].mxu0
        %v556 = vadd.f32 0.0, %v555
        %v557 = vpop.f32.mrb[0].mxu0
        %558 = vmatprep.mubr.f32.mxu0 0.0
        %559 = vmatmul.mubr.f32.gmra.mrb[0].mxu0 %v410
        %v560 = vpop.f32.mrb[0].mxu0
        %v561 = vadd.f32 0.0, %v560
        %v562 = vpop.f32.mrb[0].mxu0
        %563 = vdwg.mxu0
        %v564 = vld [vmem:[%s340] sm:$0xff]
        %v565 = vld [vmem:[#allocation10] sm:$0xff]
        %v566 = vld [vmem:[#allocation10 + $0x8] sm:$0xff]
        %v568 = vsel %vm405, %v564, 0
        %570 = vmatprep.subr.mxu0 0.0
        %571 = vmatpush1.msra.mxu0 %v565
        %572 = vmatprep.subr.mxu0 0.0
        %573 = vmatpush1.msra.mxu0 %v566
        %574 = vmatprep.subr.mxu0 0.0
        %575 = vmatpush1.msra.mxu0 0.0
        %576 = vmatprep.subr.mxu0 0.0
        %577 = vmatpush1.msra.mxu0 0.0
        %578 = vmatprep.subr.mxu0 0.0
        %579 = vmatpush1.msra.mxu0 0.0
        %580 = vmatprep.subr.mxu0 0.0
        %581 = vmatpush1.msra.mxu0 0.0
        %582 = vmatprep.subr.mxu0 0.0
        %583 = vmatpush1.msra.mxu0 0.0
        %584 = vmatprep.subr.mxu0 0.0
        %585 = vmatpush1.msra.mxu0 0.0
        %586 = vmatprep.subr.mxu0 0.0
        %587 = vmatpush1.msra.mxu0 0.0
        %588 = vmatprep.subr.mxu0 0.0
        %589 = vmatpush1.msra.mxu0 0.0
        %590 = vmatprep.subr.mxu0 0.0
        %591 = vmatpush1.msra.mxu0 0.0
        %592 = vmatprep.subr.mxu0 0.0
        %593 = vmatpush1.msra.mxu0 0.0
        %594 = vmatprep.subr.mxu0 0.0
        %595 = vmatpush1.msra.mxu0 0.0
        %596 = vmatprep.subr.mxu0 0.0
        %597 = vmatpush1.msra.mxu0 0.0
        %598 = vmatprep.subr.mxu0 0.0
        %599 = vmatpush1.msra.mxu0 0.0
        %600 = vmatprep.subr.mxu0 0.0
        %601 = vmatpush1.msra.mxu0 0.0
        %602 = vmatprep.subr.mxu0 0.0
        %603 = vmatpush1.msra.mxu0 0.0
        %604 = vmatprep.subr.mxu0 0.0
        %605 = vmatpush1.msra.mxu0 0.0
        %606 = vmatprep.subr.mxu0 0.0
        %607 = vmatpush1.msra.mxu0 0.0
        %608 = vmatprep.subr.mxu0 0.0
        %609 = vmatpush1.msra.mxu0 0.0
        %610 = vmatprep.subr.mxu0 0.0
        %611 = vmatpush1.msra.mxu0 0.0
        %612 = vmatprep.subr.mxu0 0.0
        %613 = vmatpush1.msra.mxu0 0.0
        %614 = vmatprep.subr.mxu0 0.0
        %615 = vmatpush1.msra.mxu0 0.0
        %616 = vmatprep.subr.mxu0 0.0
        %617 = vmatpush1.msra.mxu0 0.0
        %618 = vmatprep.subr.mxu0 0.0
        %619 = vmatpush1.msra.mxu0 0.0
        %620 = vmatprep.subr.mxu0 0.0
        %621 = vmatpush1.msra.mxu0 0.0
        %622 = vmatprep.subr.mxu0 0.0
        %623 = vmatpush1.msra.mxu0 0.0
        %624 = vmatprep.subr.mxu0 0.0
        %625 = vmatpush1.msra.mxu0 0.0
        %626 = vmatprep.subr.mxu0 0.0
        %627 = vmatpush1.msra.mxu0 0.0
        %628 = vmatprep.subr.mxu0 0.0
        %629 = vmatpush1.msra.mxu0 0.0
        %630 = vmatprep.subr.mxu0 0.0
        %631 = vmatpush1.msra.mxu0 0.0
        %632 = vmatprep.subr.mxu0 0.0
        %633 = vmatpush1.msra.mxu0 0.0
        %634 = vmatprep.mubr.f32.mxu0 0.0
        %635 = vmatmul.mubr.f32.gmra.mrb[0].mxu0 %v568
        %v636 = vpop.f32.mrb[0].mxu0
        %v637 = vadd.f32 0.0, %v636
        %v638 = vpop.f32.mrb[0].mxu0
        %639 = vdwg.mxu0
        %vm640 = vcmask 64512
        %v641 = vsel %vm640, %v556, -inf
        %v642 = vsel %vm640, %v561, -inf
        %v643 = vmax.f32 %v641, %v642
        %v644 = vrot.slane %v643, 4
        %v645 = vmax.f32 %v643, %v644
        %v646 = vrot.slane %v645, 2
        %v647 = vmax.f32 %v645, %v646
        %v648 = vrot.slane %v647, 1
        %v649 = vmax.f32 %v647, %v648
        %v650 = vadd.f32 %v637, %v649
        %vm651 = vcmp.ge.f32.partialorder %v650, 0.0
        %v652 = vmul.f32 %v650, 0.2
        %v653 = vsel %vm651, %v650, %v652
        %654 = vxpose.xlu0.b32.start [1/16] %v556, 128
        %655 = vxpose.xlu0.b32.cont [2/16] %v561, 128
        %656 = vxpose.xlu0.b32.cont [3/16] 0.0, 128
        %657 = vxpose.xlu0.b32.cont [4/16] 0.0, 128
        %658 = vxpose.xlu0.b32.cont [5/16] 0.0, 128
        %659 = vxpose.xlu0.b32.cont [6/16] 0.0, 128
        %660 = vxpose.xlu0.b32.cont [7/16] 0.0, 128
        %661 = vxpose.xlu0.b32.cont [8/16] 0.0, 128
        %662 = vxpose.xlu0.b32.cont [9/16] 0.0, 128
        %663 = vxpose.xlu0.b32.cont [10/16] 0.0, 128
        %664 = vxpose.xlu0.b32.cont [11/16] 0.0, 128
        %665 = vxpose.xlu0.b32.cont [12/16] 0.0, 128
        %666 = vxpose.xlu0.b32.cont [13/16] 0.0, 128
        %667 = vxpose.xlu0.b32.cont [14/16] 0.0, 128
        %668 = vxpose.xlu0.b32.cont [15/16] 0.0, 128
        %669 = vxpose.xlu0.b32.end [16/16] 0.0, 128
        %v670 = vpop.trf.xlu0
        %v671 = vpop.trf.xlu0
        %v672 = vpop.trf.xlu0
        %v673 = vpop.trf.xlu0
        %v674 = vpop.trf.xlu0
        %v675 = vpop.trf.xlu0
        %v676 = vpop.trf.xlu0
        %v677 = vpop.trf.xlu0
        %v678 = vpop.trf.xlu0
        %v679 = vpop.trf.xlu0
        %v680 = vpop.trf.xlu0
        %v681 = vpop.trf.xlu0
        %v682 = vpop.trf.xlu0
        %v683 = vpop.trf.xlu0
        %v684 = vpop.trf.xlu0
        %v685 = vpop.trf.xlu0
        %v686 = vld [vmem:[%s361] sm:$0xf]
        %688 = vset.pattern.permute.xlu0 0
        %689 = vperm.xlu0 %688, %v637
        %v690 = vpop.permute.xlu0 %689
        %v692 = vlaneseq
        %v693 = vshrl.u32 %v692, 7
        %v694 = vsub.s32 0, %v693
        %v695 = vrot.slane %v670, %v694
        %v696 = vadd.f32 %v690, %v695
        %vm697 = vcmp.ge.f32.partialorder %v696, 0.0
        %v698 = vmul.f32 %v696, 0.2
        %v699 = vsel %vm697, %v696, %v698
        %v700 = vunpack.c.l.bf16 %v686
        %v701 = vadd.f32 %v699, %v700
        %703 = vset.pattern.permute.xlu0 0
        %704 = vperm.xlu0 %703, %v653
        %v705 = vpop.permute.xlu0 %704
        %v707 = vsub.f32 %v701, %v705
        %v708 = vmul.f32 %v707, 1.442695
        %v709 = vpow.pop %v708
        %v710 = vsel %vm640, %v479, 1.0
        %v711 = vsel %vm640, %v484, 1.0
        %v713 = vsel %vm405, %v709, 0
        %715 = vmatprep.subr.mxu0 0.0
        %716 = vmatpush1.msra.mxu0 %v710
        %717 = vmatprep.subr.mxu0 0.0
        %718 = vmatpush1.msra.mxu0 %v711
        %719 = vmatprep.subr.mxu0 0.0
        %720 = vmatpush1.msra.mxu0 0.0
        %721 = vmatprep.subr.mxu0 0.0
        %722 = vmatpush1.msra.mxu0 0.0
        %723 = vmatprep.subr.mxu0 0.0
        %724 = vmatpush1.msra.mxu0 0.0
        %725 = vmatprep.subr.mxu0 0.0
        %726 = vmatpush1.msra.mxu0 0.0
        %727 = vmatprep.subr.mxu0 0.0
        %728 = vmatpush1.msra.mxu0 0.0
        %729 = vmatprep.subr.mxu0 0.0
        %730 = vmatpush1.msra.mxu0 0.0
        %731 = vmatprep.subr.mxu0 0.0
        %732 = vmatpush1.msra.mxu0 0.0
        %733 = vmatprep.subr.mxu0 0.0
        %734 = vmatpush1.msra.mxu0 0.0
        %735 = vmatprep.subr.mxu0 0.0
        %736 = vmatpush1.msra.mxu0 0.0
        %737 = vmatprep.subr.mxu0 0.0
        %738 = vmatpush1.msra.mxu0 0.0
        %739 = vmatprep.subr.mxu0 0.0
        %740 = vmatpush1.msra.mxu0 0.0
        %741 = vmatprep.subr.mxu0 0.0
        %742 = vmatpush1.msra.mxu0 0.0
        %743 = vmatprep.subr.mxu0 0.0
        %744 = vmatpush1.msra.mxu0 0.0
        %745 = vmatprep.subr.mxu0 0.0
        %746 = vmatpush1.msra.mxu0 0.0
        %747 = vmatprep.subr.mxu0 0.0
        %748 = vmatpush1.msra.mxu0 0.0
        %749 = vmatprep.subr.mxu0 0.0
        %750 = vmatpush1.msra.mxu0 0.0
        %751 = vmatprep.subr.mxu0 0.0
        %752 = vmatpush1.msra.mxu0 0.0
        %753 = vmatprep.subr.mxu0 0.0
        %754 = vmatpush1.msra.mxu0 0.0
        %755 = vmatprep.subr.mxu0 0.0
        %756 = vmatpush1.msra.mxu0 0.0
        %757 = vmatprep.subr.mxu0 0.0
        %758 = vmatpush1.msra.mxu0 0.0
        %759 = vmatprep.subr.mxu0 0.0
        %760 = vmatpush1.msra.mxu0 0.0
        %761 = vmatprep.subr.mxu0 0.0
        %762 = vmatpush1.msra.mxu0 0.0
        %763 = vmatprep.subr.mxu0 0.0
        %764 = vmatpush1.msra.mxu0 0.0
        %765 = vmatprep.subr.mxu0 0.0
        %766 = vmatpush1.msra.mxu0 0.0
        %767 = vmatprep.subr.mxu0 0.0
        %768 = vmatpush1.msra.mxu0 0.0
        %769 = vmatprep.subr.mxu0 0.0
        %770 = vmatpush1.msra.mxu0 0.0
        %771 = vmatprep.subr.mxu0 0.0
        %772 = vmatpush1.msra.mxu0 0.0
        %773 = vmatprep.subr.mxu0 0.0
        %774 = vmatpush1.msra.mxu0 0.0
        %775 = vmatprep.subr.mxu0 0.0
        %776 = vmatpush1.msra.mxu0 0.0
        %777 = vmatprep.subr.mxu0 0.0
        %778 = vmatpush1.msra.mxu0 0.0
        %779 = vmatprep.mubr.f32.mxu0 0.0
        %780 = vmatmul.mubr.f32.gmra.mrb[0].mxu0 %v713
        %v781 = vpop.f32.mrb[0].mxu0
        %v782 = vadd.f32 0.0, %v781
        %v783 = vpop.f32.mrb[0].mxu0
        %784 = vdwg.mxu0
        %v785 = vrcp.pop %v782
        %787 = vset.pattern.permute.xlu0 8
        %788 = vperm.xlu0 %787, %v785
        %v789 = vpop.permute.xlu0 %788
        %v791 = vmul.f32 %v782, %v789
        %792 = vset.pattern.permute.xlu0 1
        %793 = vperm.xlu0 %792, %v637
        %v794 = vpop.permute.xlu0 %793
        %v796 = vlaneseq
        %v797 = vshrl.u32 %v796, 7
        %v798 = vsub.s32 1, %v797
        %v799 = vrot.slane %v670, %v798
        %v800 = vadd.f32 %v794, %v799
        %vm801 = vcmp.ge.f32.partialorder %v800, 0.0
        %v802 = vmul.f32 %v800, 0.2
        %v803 = vsel %vm801, %v800, %v802
        %v804 = vadd.f32 %v803, %v700
        %805 = vset.pattern.permute.xlu0 1
        %806 = vperm.xlu0 %805, %v653
        %v807 = vpop.permute.xlu0 %806
        %v809 = vsub.f32 %v804, %v807
        %v810 = vmul.f32 %v809, 1.442695
        %v811 = vpow.pop %v810
        %814 = vrot.lane.b32.xlu0 %v479, 120
        %v815 = vpop.permute.xlu0 %814
        %816 = vrot.lane.b32.xlu0 %v484, 120
        %v817 = vpop.permute.xlu0 %816
        %v820 = vsel %vm640, %v815, 1.0
        %v821 = vsel %vm640, %v817, 1.0
        %v823 = vsel %vm405, %v811, 0
        %825 = vmatprep.subr.mxu0 0.0
        %826 = vmatpush1.msra.mxu0 %v820
        %827 = vmatprep.subr.mxu0 0.0
        %828 = vmatpush1.msra.mxu0 %v821
        %829 = vmatprep.subr.mxu0 0.0
        %830 = vmatpush1.msra.mxu0 0.0
        %831 = vmatprep.subr.mxu0 0.0
        %832 = vmatpush1.msra.mxu0 0.0
        %833 = vmatprep.subr.mxu0 0.0
        %834 = vmatpush1.msra.mxu0 0.0
        %835 = vmatprep.subr.mxu0 0.0
        %836 = vmatpush1.msra.mxu0 0.0
        %837 = vmatprep.subr.mxu0 0.0
        %838 = vmatpush1.msra.mxu0 0.0
        %839 = vmatprep.subr.mxu0 0.0
        %840 = vmatpush1.msra.mxu0 0.0
        %841 = vmatprep.subr.mxu0 0.0
        %842 = vmatpush1.msra.mxu0 0.0
        %843 = vmatprep.subr.mxu0 0.0
        %844 = vmatpush1.msra.mxu0 0.0
        %845 = vmatprep.subr.mxu0 0.0
        %846 = vmatpush1.msra.mxu0 0.0
        %847 = vmatprep.subr.mxu0 0.0
        %848 = vmatpush1.msra.mxu0 0.0
        %849 = vmatprep.subr.mxu0 0.0
        %850 = vmatpush1.msra.mxu0 0.0
        %851 = vmatprep.subr.mxu0 0.0
        %852 = vmatpush1.msra.mxu0 0.0
        %853 = vmatprep.subr.mxu0 0.0
        %854 = vmatpush1.msra.mxu0 0.0
        %855 = vmatprep.subr.mxu0 0.0
        %856 = vmatpush1.msra.mxu0 0.0
        %857 = vmatprep.subr.mxu0 0.0
        %858 = vmatpush1.msra.mxu0 0.0
        %859 = vmatprep.subr.mxu0 0.0
        %860 = vmatpush1.msra.mxu0 0.0
        %861 = vmatprep.subr.mxu0 0.0
        %862 = vmatpush1.msra.mxu0 0.0
        %863 = vmatprep.subr.mxu0 0.0
        %864 = vmatpush1.msra.mxu0 0.0
        %865 = vmatprep.subr.mxu0 0.0
        %866 = vmatpush1.msra.mxu0 0.0
        %867 = vmatprep.subr.mxu0 0.0
        %868 = vmatpush1.msra.mxu0 0.0
        %869 = vmatprep.subr.mxu0 0.0
        %870 = vmatpush1.msra.mxu0 0.0
        %871 = vmatprep.subr.mxu0 0.0
        %872 = vmatpush1.msra.mxu0 0.0
        %873 = vmatprep.subr.mxu0 0.0
        %874 = vmatpush1.msra.mxu0 0.0
        %875 = vmatprep.subr.mxu0 0.0
        %876 = vmatpush1.msra.mxu0 0.0
        %877 = vmatprep.subr.mxu0 0.0
        %878 = vmatpush1.msra.mxu0 0.0
        %879 = vmatprep.subr.mxu0 0.0
        %880 = vmatpush1.msra.mxu0 0.0
        %881 = vmatprep.subr.mxu0 0.0
        %882 = vmatpush1.msra.mxu0 0.0
        %883 = vmatprep.subr.mxu0 0.0
        %884 = vmatpush1.msra.mxu0 0.0
        %885 = vmatprep.subr.mxu0 0.0
        %886 = vmatpush1.msra.mxu0 0.0
        %887 = vmatprep.subr.mxu0 0.0
        %888 = vmatpush1.msra.mxu0 0.0
        %889 = vmatprep.mubr.f32.mxu0 0.0
        %890 = vmatmul.mubr.f32.gmra.mrb[0].mxu0 %v823
        %v891 = vpop.f32.mrb[0].mxu0
        %v892 = vadd.f32 0.0, %v891
        %v893 = vpop.f32.mrb[0].mxu0
        %894 = vdwg.mxu0
        %v895 = vrcp.pop %v892
        %897 = vset.pattern.permute.xlu0 8
        %898 = vperm.xlu0 %897, %v895
        %v899 = vpop.permute.xlu0 %898
        %v901 = vmul.f32 %v892, %v899
        %902 = vset.pattern.permute.xlu0 2
        %903 = vperm.xlu0 %902, %v637
        %v904 = vpop.permute.xlu0 %903
        %v906 = vlaneseq
        %v907 = vshrl.u32 %v906, 7
        %v908 = vsub.s32 2, %v907
        %v909 = vrot.slane %v670, %v908
        %v910 = vadd.f32 %v904, %v909
        %vm911 = vcmp.ge.f32.partialorder %v910, 0.0
        %v912 = vmul.f32 %v910, 0.2
        %v913 = vsel %vm911, %v910, %v912
        %v914 = vadd.f32 %v913, %v700
        %915 = vset.pattern.permute.xlu0 2
        %916 = vperm.xlu0 %915, %v653
        %v917 = vpop.permute.xlu0 %916
        %v919 = vsub.f32 %v914, %v917
        %v920 = vmul.f32 %v919, 1.442695
        %v921 = vpow.pop %v920
        %922 = vrot.lane.b32.xlu0 %v479, 112
        %v923 = vpop.permute.xlu0 %922
        %924 = vrot.lane.b32.xlu0 %v484, 112
        %v925 = vpop.permute.xlu0 %924
        %v928 = vsel %vm640, %v923, 1.0
        %v929 = vsel %vm640, %v925, 1.0
        %v931 = vsel %vm405, %v921, 0
        %933 = vmatprep.subr.mxu0 0.0
        %934 = vmatpush1.msra.mxu0 %v928
        %935 = vmatprep.subr.mxu0 0.0
        %936 = vmatpush1.msra.mxu0 %v929
        %937 = vmatprep.subr.mxu0 0.0
        %938 = vmatpush1.msra.mxu0 0.0
        %939 = vmatprep.subr.mxu0 0.0
        %940 = vmatpush1.msra.mxu0 0.0
        %941 = vmatprep.subr.mxu0 0.0
        %942 = vmatpush1.msra.mxu0 0.0
        %943 = vmatprep.subr.mxu0 0.0
        %944 = vmatpush1.msra.mxu0 0.0
        %945 = vmatprep.subr.mxu0 0.0
        %946 = vmatpush1.msra.mxu0 0.0
        %947 = vmatprep.subr.mxu0 0.0
        %948 = vmatpush1.msra.mxu0 0.0
        %949 = vmatprep.subr.mxu0 0.0
        %950 = vmatpush1.msra.mxu0 0.0
        %951 = vmatprep.subr.mxu0 0.0
        %952 = vmatpush1.msra.mxu0 0.0
        %953 = vmatprep.subr.mxu0 0.0
        %954 = vmatpush1.msra.mxu0 0.0
        %955 = vmatprep.subr.mxu0 0.0
        %956 = vmatpush1.msra.mxu0 0.0
        %957 = vmatprep.subr.mxu0 0.0
        %958 = vmatpush1.msra.mxu0 0.0
        %959 = vmatprep.subr.mxu0 0.0
        %960 = vmatpush1.msra.mxu0 0.0
        %961 = vmatprep.subr.mxu0 0.0
        %962 = vmatpush1.msra.mxu0 0.0
        %963 = vmatprep.subr.mxu0 0.0
        %964 = vmatpush1.msra.mxu0 0.0
        %965 = vmatprep.subr.mxu0 0.0
        %966 = vmatpush1.msra.mxu0 0.0
        %967 = vmatprep.subr.mxu0 0.0
        %968 = vmatpush1.msra.mxu0 0.0
        %969 = vmatprep.subr.mxu0 0.0
        %970 = vmatpush1.msra.mxu0 0.0
        %971 = vmatprep.subr.mxu0 0.0
        %972 = vmatpush1.msra.mxu0 0.0
        %973 = vmatprep.subr.mxu0 0.0
        %974 = vmatpush1.msra.mxu0 0.0
        %975 = vmatprep.subr.mxu0 0.0
        %976 = vmatpush1.msra.mxu0 0.0
        %977 = vmatprep.subr.mxu0 0.0
        %978 = vmatpush1.msra.mxu0 0.0
        %979 = vmatprep.subr.mxu0 0.0
        %980 = vmatpush1.msra.mxu0 0.0
        %981 = vmatprep.subr.mxu0 0.0
        %982 = vmatpush1.msra.mxu0 0.0
        %983 = vmatprep.subr.mxu0 0.0
        %984 = vmatpush1.msra.mxu0 0.0
        %985 = vmatprep.subr.mxu0 0.0
        %986 = vmatpush1.msra.mxu0 0.0
        %987 = vmatprep.subr.mxu0 0.0
        %988 = vmatpush1.msra.mxu0 0.0
        %989 = vmatprep.subr.mxu0 0.0
        %990 = vmatpush1.msra.mxu0 0.0
        %991 = vmatprep.subr.mxu0 0.0
        %992 = vmatpush1.msra.mxu0 0.0
        %993 = vmatprep.subr.mxu0 0.0
        %994 = vmatpush1.msra.mxu0 0.0
        %995 = vmatprep.subr.mxu0 0.0
        %996 = vmatpush1.msra.mxu0 0.0
        %997 = vmatprep.mubr.f32.mxu0 0.0
        %998 = vmatmul.mubr.f32.gmra.mrb[0].mxu0 %v931
        %v999 = vpop.f32.mrb[0].mxu0
        %v1000 = vadd.f32 0.0, %v999
        %v1001 = vpop.f32.mrb[0].mxu0
        %1002 = vdwg.mxu0
        %v1003 = vrcp.pop %v1000
        %1005 = vset.pattern.permute.xlu0 8
        %1006 = vperm.xlu0 %1005, %v1003
        %v1007 = vpop.permute.xlu0 %1006
        %v1009 = vmul.f32 %v1000, %v1007
        %1010 = vset.pattern.permute.xlu0 3
        %1011 = vperm.xlu0 %1010, %v637
        %v1012 = vpop.permute.xlu0 %1011
        %v1014 = vlaneseq
        %v1015 = vshrl.u32 %v1014, 7
        %v1016 = vsub.s32 3, %v1015
        %v1017 = vrot.slane %v670, %v1016
        %v1018 = vadd.f32 %v1012, %v1017
        %vm1019 = vcmp.ge.f32.partialorder %v1018, 0.0
        %v1020 = vmul.f32 %v1018, 0.2
        %v1021 = vsel %vm1019, %v1018, %v1020
        %v1022 = vadd.f32 %v1021, %v700
        %1023 = vset.pattern.permute.xlu0 3
        %1024 = vperm.xlu0 %1023, %v653
        %v1025 = vpop.permute.xlu0 %1024
        %v1027 = vsub.f32 %v1022, %v1025
        %v1028 = vmul.f32 %v1027, 1.442695
        %v1029 = vpow.pop %v1028
        %1030 = vrot.lane.b32.xlu0 %v479, 104
        %v1031 = vpop.permute.xlu0 %1030
        %1032 = vrot.lane.b32.xlu0 %v484, 104
        %v1033 = vpop.permute.xlu0 %1032
        %v1036 = vsel %vm640, %v1031, 1.0
        %v1037 = vsel %vm640, %v1033, 1.0
        %v1039 = vsel %vm405, %v1029, 0
        %1041 = vmatprep.subr.mxu0 0.0
        %1042 = vmatpush1.msra.mxu0 %v1036
        %1043 = vmatprep.subr.mxu0 0.0
        %1044 = vmatpush1.msra.mxu0 %v1037
        %1045 = vmatprep.subr.mxu0 0.0
        %1046 = vmatpush1.msra.mxu0 0.0
        %1047 = vmatprep.subr.mxu0 0.0
        %1048 = vmatpush1.msra.mxu0 0.0
        %1049 = vmatprep.subr.mxu0 0.0
        %1050 = vmatpush1.msra.mxu0 0.0
        %1051 = vmatprep.subr.mxu0 0.0
        %1052 = vmatpush1.msra.mxu0 0.0
        %1053 = vmatprep.subr.mxu0 0.0
        %1054 = vmatpush1.msra.mxu0 0.0
        %1055 = vmatprep.subr.mxu0 0.0
        %1056 = vmatpush1.msra.mxu0 0.0
        %1057 = vmatprep.subr.mxu0 0.0
        %1058 = vmatpush1.msra.mxu0 0.0
        %1059 = vmatprep.subr.mxu0 0.0
        %1060 = vmatpush1.msra.mxu0 0.0
        %1061 = vmatprep.subr.mxu0 0.0
        %1062 = vmatpush1.msra.mxu0 0.0
        %1063 = vmatprep.subr.mxu0 0.0
        %1064 = vmatpush1.msra.mxu0 0.0
        %1065 = vmatprep.subr.mxu0 0.0
        %1066 = vmatpush1.msra.mxu0 0.0
        %1067 = vmatprep.subr.mxu0 0.0
        %1068 = vmatpush1.msra.mxu0 0.0
        %1069 = vmatprep.subr.mxu0 0.0
        %1070 = vmatpush1.msra.mxu0 0.0
        %1071 = vmatprep.subr.mxu0 0.0
        %1072 = vmatpush1.msra.mxu0 0.0
        %1073 = vmatprep.subr.mxu0 0.0
        %1074 = vmatpush1.msra.mxu0 0.0
        %1075 = vmatprep.subr.mxu0 0.0
        %1076 = vmatpush1.msra.mxu0 0.0
        %1077 = vmatprep.subr.mxu0 0.0
        %1078 = vmatpush1.msra.mxu0 0.0
        %1079 = vmatprep.subr.mxu0 0.0
        %1080 = vmatpush1.msra.mxu0 0.0
        %1081 = vmatprep.subr.mxu0 0.0
        %1082 = vmatpush1.msra.mxu0 0.0
        %1083 = vmatprep.subr.mxu0 0.0
        %1084 = vmatpush1.msra.mxu0 0.0
        %1085 = vmatprep.subr.mxu0 0.0
        %1086 = vmatpush1.msra.mxu0 0.0
        %1087 = vmatprep.subr.mxu0 0.0
        %1088 = vmatpush1.msra.mxu0 0.0
        %1089 = vmatprep.subr.mxu0 0.0
        %1090 = vmatpush1.msra.mxu0 0.0
        %1091 = vmatprep.subr.mxu0 0.0
        %1092 = vmatpush1.msra.mxu0 0.0
        %1093 = vmatprep.subr.mxu0 0.0
        %1094 = vmatpush1.msra.mxu0 0.0
        %1095 = vmatprep.subr.mxu0 0.0
        %1096 = vmatpush1.msra.mxu0 0.0
        %1097 = vmatprep.subr.mxu0 0.0
        %1098 = vmatpush1.msra.mxu0 0.0
        %1099 = vmatprep.subr.mxu0 0.0
        %1100 = vmatpush1.msra.mxu0 0.0
        %1101 = vmatprep.subr.mxu0 0.0
        %1102 = vmatpush1.msra.mxu0 0.0
        %1103 = vmatprep.subr.mxu0 0.0
        %1104 = vmatpush1.msra.mxu0 0.0
        %1105 = vmatprep.mubr.f32.mxu0 0.0
        %1106 = vmatmul.mubr.f32.gmra.mrb[0].mxu0 %v1039
        %v1107 = vpop.f32.mrb[0].mxu0
        %v1108 = vadd.f32 0.0, %v1107
        %v1109 = vpop.f32.mrb[0].mxu0
        %1110 = vdwg.mxu0
        %v1111 = vrcp.pop %v1108
        %1113 = vset.pattern.permute.xlu0 8
        %1114 = vperm.xlu0 %1113, %v1111
        %v1115 = vpop.permute.xlu0 %1114
        %v1117 = vmul.f32 %v1108, %v1115
        %1118 = vset.pattern.permute.xlu0 4
        %1119 = vperm.xlu0 %1118, %v637
        %v1120 = vpop.permute.xlu0 %1119
        %v1122 = vlaneseq
        %v1123 = vshrl.u32 %v1122, 7
        %v1124 = vsub.s32 4, %v1123
        %v1125 = vrot.slane %v670, %v1124
        %v1126 = vadd.f32 %v1120, %v1125
        %vm1127 = vcmp.ge.f32.partialorder %v1126, 0.0
        %v1128 = vmul.f32 %v1126, 0.2
        %v1129 = vsel %vm1127, %v1126, %v1128
        %v1130 = vadd.f32 %v1129, %v700
        %1131 = vset.pattern.permute.xlu0 4
        %1132 = vperm.xlu0 %1131, %v653
        %v1133 = vpop.permute.xlu0 %1132
        %v1135 = vsub.f32 %v1130, %v1133
        %v1136 = vmul.f32 %v1135, 1.442695
        %v1137 = vpow.pop %v1136
        %1138 = vrot.lane.b32.xlu0 %v479, 96
        %v1139 = vpop.permute.xlu0 %1138
        %1140 = vrot.lane.b32.xlu0 %v484, 96
        %v1141 = vpop.permute.xlu0 %1140
        %v1144 = vsel %vm640, %v1139, 1.0
        %v1145 = vsel %vm640, %v1141, 1.0
        %v1147 = vsel %vm405, %v1137, 0
        %1149 = vmatprep.subr.mxu0 0.0
        %1150 = vmatpush1.msra.mxu0 %v1144
        %1151 = vmatprep.subr.mxu0 0.0
        %1152 = vmatpush1.msra.mxu0 %v1145
        %1153 = vmatprep.subr.mxu0 0.0
        %1154 = vmatpush1.msra.mxu0 0.0
        %1155 = vmatprep.subr.mxu0 0.0
        %1156 = vmatpush1.msra.mxu0 0.0
        %1157 = vmatprep.subr.mxu0 0.0
        %1158 = vmatpush1.msra.mxu0 0.0
        %1159 = vmatprep.subr.mxu0 0.0
        %1160 = vmatpush1.msra.mxu0 0.0
        %1161 = vmatprep.subr.mxu0 0.0
        %1162 = vmatpush1.msra.mxu0 0.0
        %1163 = vmatprep.subr.mxu0 0.0
        %1164 = vmatpush1.msra.mxu0 0.0
        %1165 = vmatprep.subr.mxu0 0.0
        %1166 = vmatpush1.msra.mxu0 0.0
        %1167 = vmatprep.subr.mxu0 0.0
        %1168 = vmatpush1.msra.mxu0 0.0
        %1169 = vmatprep.subr.mxu0 0.0
        %1170 = vmatpush1.msra.mxu0 0.0
        %1171 = vmatprep.subr.mxu0 0.0
        %1172 = vmatpush1.msra.mxu0 0.0
        %1173 = vmatprep.subr.mxu0 0.0
        %1174 = vmatpush1.msra.mxu0 0.0
        %1175 = vmatprep.subr.mxu0 0.0
        %1176 = vmatpush1.msra.mxu0 0.0
        %1177 = vmatprep.subr.mxu0 0.0
        %1178 = vmatpush1.msra.mxu0 0.0
        %1179 = vmatprep.subr.mxu0 0.0
        %1180 = vmatpush1.msra.mxu0 0.0
        %1181 = vmatprep.subr.mxu0 0.0
        %1182 = vmatpush1.msra.mxu0 0.0
        %1183 = vmatprep.subr.mxu0 0.0
        %1184 = vmatpush1.msra.mxu0 0.0
        %1185 = vmatprep.subr.mxu0 0.0
        %1186 = vmatpush1.msra.mxu0 0.0
        %1187 = vmatprep.subr.mxu0 0.0
        %1188 = vmatpush1.msra.mxu0 0.0
        %1189 = vmatprep.subr.mxu0 0.0
        %1190 = vmatpush1.msra.mxu0 0.0
        %1191 = vmatprep.subr.mxu0 0.0
        %1192 = vmatpush1.msra.mxu0 0.0
        %1193 = vmatprep.subr.mxu0 0.0
        %1194 = vmatpush1.msra.mxu0 0.0
        %1195 = vmatprep.subr.mxu0 0.0
        %1196 = vmatpush1.msra.mxu0 0.0
        %1197 = vmatprep.subr.mxu0 0.0
        %1198 = vmatpush1.msra.mxu0 0.0
        %1199 = vmatprep.subr.mxu0 0.0
        %1200 = vmatpush1.msra.mxu0 0.0
        %1201 = vmatprep.subr.mxu0 0.0
        %1202 = vmatpush1.msra.mxu0 0.0
        %1203 = vmatprep.subr.mxu0 0.0
        %1204 = vmatpush1.msra.mxu0 0.0
        %1205 = vmatprep.subr.mxu0 0.0
        %1206 = vmatpush1.msra.mxu0 0.0
        %1207 = vmatprep.subr.mxu0 0.0
        %1208 = vmatpush1.msra.mxu0 0.0
        %1209 = vmatprep.subr.mxu0 0.0
        %1210 = vmatpush1.msra.mxu0 0.0
        %1211 = vmatprep.subr.mxu0 0.0
        %1212 = vmatpush1.msra.mxu0 0.0
        %1213 = vmatprep.mubr.f32.mxu0 0.0
        %1214 = vmatmul.mubr.f32.gmra.mrb[0].mxu0 %v1147
        %v1215 = vpop.f32.mrb[0].mxu0
        %v1216 = vadd.f32 0.0, %v1215
        %v1217 = vpop.f32.mrb[0].mxu0
        %1218 = vdwg.mxu0
        %v1219 = vrcp.pop %v1216
        %1221 = vset.pattern.permute.xlu0 8
        %1222 = vperm.xlu0 %1221, %v1219
        %v1223 = vpop.permute.xlu0 %1222
        %v1225 = vmul.f32 %v1216, %v1223
        %1226 = vset.pattern.permute.xlu0 5
        %1227 = vperm.xlu0 %1226, %v637
        %v1228 = vpop.permute.xlu0 %1227
        %v1230 = vlaneseq
        %v1231 = vshrl.u32 %v1230, 7
        %v1232 = vsub.s32 5, %v1231
        %v1233 = vrot.slane %v670, %v1232
        %v1234 = vadd.f32 %v1228, %v1233
        %vm1235 = vcmp.ge.f32.partialorder %v1234, 0.0
        %v1236 = vmul.f32 %v1234, 0.2
        %v1237 = vsel %vm1235, %v1234, %v1236
        %v1238 = vadd.f32 %v1237, %v700
        %1239 = vset.pattern.permute.xlu0 5
        %1240 = vperm.xlu0 %1239, %v653
        %v1241 = vpop.permute.xlu0 %1240
        %v1243 = vsub.f32 %v1238, %v1241
        %v1244 = vmul.f32 %v1243, 1.442695
        %v1245 = vpow.pop %v1244
        %1246 = vrot.lane.b32.xlu0 %v479, 88
        %v1247 = vpop.permute.xlu0 %1246
        %1248 = vrot.lane.b32.xlu0 %v484, 88
        %v1249 = vpop.permute.xlu0 %1248
        %v1252 = vsel %vm640, %v1247, 1.0
        %v1253 = vsel %vm640, %v1249, 1.0
        %v1255 = vsel %vm405, %v1245, 0
        %1257 = vmatprep.subr.mxu0 0.0
        %1258 = vmatpush1.msra.mxu0 %v1252
        %1259 = vmatprep.subr.mxu0 0.0
        %1260 = vmatpush1.msra.mxu0 %v1253
        %1261 = vmatprep.subr.mxu0 0.0
        %1262 = vmatpush1.msra.mxu0 0.0
        %1263 = vmatprep.subr.mxu0 0.0
        %1264 = vmatpush1.msra.mxu0 0.0
        %1265 = vmatprep.subr.mxu0 0.0
        %1266 = vmatpush1.msra.mxu0 0.0
        %1267 = vmatprep.subr.mxu0 0.0
        %1268 = vmatpush1.msra.mxu0 0.0
        %1269 = vmatprep.subr.mxu0 0.0
        %1270 = vmatpush1.msra.mxu0 0.0
        %1271 = vmatprep.subr.mxu0 0.0
        %1272 = vmatpush1.msra.mxu0 0.0
        %1273 = vmatprep.subr.mxu0 0.0
        %1274 = vmatpush1.msra.mxu0 0.0
        %1275 = vmatprep.subr.mxu0 0.0
        %1276 = vmatpush1.msra.mxu0 0.0
        %1277 = vmatprep.subr.mxu0 0.0
        %1278 = vmatpush1.msra.mxu0 0.0
        %1279 = vmatprep.subr.mxu0 0.0
        %1280 = vmatpush1.msra.mxu0 0.0
        %1281 = vmatprep.subr.mxu0 0.0
        %1282 = vmatpush1.msra.mxu0 0.0
        %1283 = vmatprep.subr.mxu0 0.0
        %1284 = vmatpush1.msra.mxu0 0.0
        %1285 = vmatprep.subr.mxu0 0.0
        %1286 = vmatpush1.msra.mxu0 0.0
        %1287 = vmatprep.subr.mxu0 0.0
        %1288 = vmatpush1.msra.mxu0 0.0
        %1289 = vmatprep.subr.mxu0 0.0
        %1290 = vmatpush1.msra.mxu0 0.0
        %1291 = vmatprep.subr.mxu0 0.0
        %1292 = vmatpush1.msra.mxu0 0.0
        %1293 = vmatprep.subr.mxu0 0.0
        %1294 = vmatpush1.msra.mxu0 0.0
        %1295 = vmatprep.subr.mxu0 0.0
        %1296 = vmatpush1.msra.mxu0 0.0
        %1297 = vmatprep.subr.mxu0 0.0
        %1298 = vmatpush1.msra.mxu0 0.0
        %1299 = vmatprep.subr.mxu0 0.0
        %1300 = vmatpush1.msra.mxu0 0.0
        %1301 = vmatprep.subr.mxu0 0.0
        %1302 = vmatpush1.msra.mxu0 0.0
        %1303 = vmatprep.subr.mxu0 0.0
        %1304 = vmatpush1.msra.mxu0 0.0
        %1305 = vmatprep.subr.mxu0 0.0
        %1306 = vmatpush1.msra.mxu0 0.0
        %1307 = vmatprep.subr.mxu0 0.0
        %1308 = vmatpush1.msra.mxu0 0.0
        %1309 = vmatprep.subr.mxu0 0.0
        %1310 = vmatpush1.msra.mxu0 0.0
        %1311 = vmatprep.subr.mxu0 0.0
        %1312 = vmatpush1.msra.mxu0 0.0
        %1313 = vmatprep.subr.mxu0 0.0
        %1314 = vmatpush1.msra.mxu0 0.0
        %1315 = vmatprep.subr.mxu0 0.0
        %1316 = vmatpush1.msra.mxu0 0.0
        %1317 = vmatprep.subr.mxu0 0.0
        %1318 = vmatpush1.msra.mxu0 0.0
        %1319 = vmatprep.subr.mxu0 0.0
        %1320 = vmatpush1.msra.mxu0 0.0
        %1321 = vmatprep.mubr.f32.mxu0 0.0
        %1322 = vmatmul.mubr.f32.gmra.mrb[0].mxu0 %v1255
        %v1323 = vpop.f32.mrb[0].mxu0
        %v1324 = vadd.f32 0.0, %v1323
        %v1325 = vpop.f32.mrb[0].mxu0
        %1326 = vdwg.mxu0
        %v1327 = vrcp.pop %v1324
        %1329 = vset.pattern.permute.xlu0 8
        %1330 = vperm.xlu0 %1329, %v1327
        %v1331 = vpop.permute.xlu0 %1330
        %v1333 = vmul.f32 %v1324, %v1331
        %1334 = vset.pattern.permute.xlu0 6
        %1335 = vperm.xlu0 %1334, %v637
        %v1336 = vpop.permute.xlu0 %1335
        %v1338 = vlaneseq
        %v1339 = vshrl.u32 %v1338, 7
        %v1340 = vsub.s32 6, %v1339
        %v1341 = vrot.slane %v670, %v1340
        %v1342 = vadd.f32 %v1336, %v1341
        %vm1343 = vcmp.ge.f32.partialorder %v1342, 0.0
        %v1344 = vmul.f32 %v1342, 0.2
        %v1345 = vsel %vm1343, %v1342, %v1344
        %v1346 = vadd.f32 %v1345, %v700
        %1347 = vset.pattern.permute.xlu0 6
        %1348 = vperm.xlu0 %1347, %v653
        %v1349 = vpop.permute.xlu0 %1348
        %v1351 = vsub.f32 %v1346, %v1349
        %v1352 = vmul.f32 %v1351, 1.442695
        %v1353 = vpow.pop %v1352
        %1354 = vrot.lane.b32.xlu0 %v479, 80
        %v1355 = vpop.permute.xlu0 %1354
        %1356 = vrot.lane.b32.xlu0 %v484, 80
        %v1357 = vpop.permute.xlu0 %1356
        %v1360 = vsel %vm640, %v1355, 1.0
        %v1361 = vsel %vm640, %v1357, 1.0
        %v1363 = vsel %vm405, %v1353, 0
        %1365 = vmatprep.subr.mxu0 0.0
        %1366 = vmatpush1.msra.mxu0 %v1360
        %1367 = vmatprep.subr.mxu0 0.0
        %1368 = vmatpush1.msra.mxu0 %v1361
        %1369 = vmatprep.subr.mxu0 0.0
        %1370 = vmatpush1.msra.mxu0 0.0
        %1371 = vmatprep.subr.mxu0 0.0
        %1372 = vmatpush1.msra.mxu0 0.0
        %1373 = vmatprep.subr.mxu0 0.0
        %1374 = vmatpush1.msra.mxu0 0.0
        %1375 = vmatprep.subr.mxu0 0.0
        %1376 = vmatpush1.msra.mxu0 0.0
        %1377 = vmatprep.subr.mxu0 0.0
        %1378 = vmatpush1.msra.mxu0 0.0
        %1379 = vmatprep.subr.mxu0 0.0
        %1380 = vmatpush1.msra.mxu0 0.0
        %1381 = vmatprep.subr.mxu0 0.0
        %1382 = vmatpush1.msra.mxu0 0.0
        %1383 = vmatprep.subr.mxu0 0.0
        %1384 = vmatpush1.msra.mxu0 0.0
        %1385 = vmatprep.subr.mxu0 0.0
        %1386 = vmatpush1.msra.mxu0 0.0
        %1387 = vmatprep.subr.mxu0 0.0
        %1388 = vmatpush1.msra.mxu0 0.0
        %1389 = vmatprep.subr.mxu0 0.0
        %1390 = vmatpush1.msra.mxu0 0.0
        %1391 = vmatprep.subr.mxu0 0.0
        %1392 = vmatpush1.msra.mxu0 0.0
        %1393 = vmatprep.subr.mxu0 0.0
        %1394 = vmatpush1.msra.mxu0 0.0
        %1395 = vmatprep.subr.mxu0 0.0
        %1396 = vmatpush1.msra.mxu0 0.0
        %1397 = vmatprep.subr.mxu0 0.0
        %1398 = vmatpush1.msra.mxu0 0.0
        %1399 = vmatprep.subr.mxu0 0.0
        %1400 = vmatpush1.msra.mxu0 0.0
        %1401 = vmatprep.subr.mxu0 0.0
        %1402 = vmatpush1.msra.mxu0 0.0
        %1403 = vmatprep.subr.mxu0 0.0
        %1404 = vmatpush1.msra.mxu0 0.0
        %1405 = vmatprep.subr.mxu0 0.0
        %1406 = vmatpush1.msra.mxu0 0.0
        %1407 = vmatprep.subr.mxu0 0.0
        %1408 = vmatpush1.msra.mxu0 0.0
        %1409 = vmatprep.subr.mxu0 0.0
        %1410 = vmatpush1.msra.mxu0 0.0
        %1411 = vmatprep.subr.mxu0 0.0
        %1412 = vmatpush1.msra.mxu0 0.0
        %1413 = vmatprep.subr.mxu0 0.0
        %1414 = vmatpush1.msra.mxu0 0.0
        %1415 = vmatprep.subr.mxu0 0.0
        %1416 = vmatpush1.msra.mxu0 0.0
        %1417 = vmatprep.subr.mxu0 0.0
        %1418 = vmatpush1.msra.mxu0 0.0
        %1419 = vmatprep.subr.mxu0 0.0
        %1420 = vmatpush1.msra.mxu0 0.0
        %1421 = vmatprep.subr.mxu0 0.0
        %1422 = vmatpush1.msra.mxu0 0.0
        %1423 = vmatprep.subr.mxu0 0.0
        %1424 = vmatpush1.msra.mxu0 0.0
        %1425 = vmatprep.subr.mxu0 0.0
        %1426 = vmatpush1.msra.mxu0 0.0
        %1427 = vmatprep.subr.mxu0 0.0
        %1428 = vmatpush1.msra.mxu0 0.0
        %1429 = vmatprep.mubr.f32.mxu0 0.0
        %1430 = vmatmul.mubr.f32.gmra.mrb[0].mxu0 %v1363
        %v1431 = vpop.f32.mrb[0].mxu0
        %v1432 = vadd.f32 0.0, %v1431
        %v1433 = vpop.f32.mrb[0].mxu0
        %1434 = vdwg.mxu0
        %v1435 = vrcp.pop %v1432
        %1437 = vset.pattern.permute.xlu0 8
        %1438 = vperm.xlu0 %1437, %v1435
        %v1439 = vpop.permute.xlu0 %1438
        %v1441 = vmul.f32 %v1432, %v1439
        %1442 = vset.pattern.permute.xlu0 7
        %1443 = vperm.xlu0 %1442, %v637
        %v1444 = vpop.permute.xlu0 %1443
        %v1446 = vlaneseq
        %v1447 = vshrl.u32 %v1446, 7
        %v1448 = vsub.s32 7, %v1447
        %v1449 = vrot.slane %v670, %v1448
        %v1450 = vadd.f32 %v1444, %v1449
        %vm1451 = vcmp.ge.f32.partialorder %v1450, 0.0
        %v1452 = vmul.f32 %v1450, 0.2
        %v1453 = vsel %vm1451, %v1450, %v1452
        %v1454 = vadd.f32 %v1453, %v700
        %1455 = vset.pattern.permute.xlu0 7
        %1456 = vperm.xlu0 %1455, %v653
        %v1457 = vpop.permute.xlu0 %1456
        %v1459 = vsub.f32 %v1454, %v1457
        %v1460 = vmul.f32 %v1459, 1.442695
        %v1461 = vpow.pop %v1460
        %1462 = vrot.lane.b32.xlu0 %v479, 72
        %v1463 = vpop.permute.xlu0 %1462
        %1464 = vrot.lane.b32.xlu0 %v484, 72
        %v1465 = vpop.permute.xlu0 %1464
        %v1468 = vsel %vm640, %v1463, 1.0
        %v1469 = vsel %vm640, %v1465, 1.0
        %v1471 = vsel %vm405, %v1461, 0
        %1473 = vmatprep.subr.mxu0 0.0
        %1474 = vmatpush1.msra.mxu0 %v1468
        %1475 = vmatprep.subr.mxu0 0.0
        %1476 = vmatpush1.msra.mxu0 %v1469
        %1477 = vmatprep.subr.mxu0 0.0
        %1478 = vmatpush1.msra.mxu0 0.0
        %1479 = vmatprep.subr.mxu0 0.0
        %1480 = vmatpush1.msra.mxu0 0.0
        %1481 = vmatprep.subr.mxu0 0.0
        %1482 = vmatpush1.msra.mxu0 0.0
        %1483 = vmatprep.subr.mxu0 0.0
        %1484 = vmatpush1.msra.mxu0 0.0
        %1485 = vmatprep.subr.mxu0 0.0
        %1486 = vmatpush1.msra.mxu0 0.0
        %1487 = vmatprep.subr.mxu0 0.0
        %1488 = vmatpush1.msra.mxu0 0.0
        %1489 = vmatprep.subr.mxu0 0.0
        %1490 = vmatpush1.msra.mxu0 0.0
        %1491 = vmatprep.subr.mxu0 0.0
        %1492 = vmatpush1.msra.mxu0 0.0
        %1493 = vmatprep.subr.mxu0 0.0
        %1494 = vmatpush1.msra.mxu0 0.0
        %1495 = vmatprep.subr.mxu0 0.0
        %1496 = vmatpush1.msra.mxu0 0.0
        %1497 = vmatprep.subr.mxu0 0.0
        %1498 = vmatpush1.msra.mxu0 0.0
        %1499 = vmatprep.subr.mxu0 0.0
        %1500 = vmatpush1.msra.mxu0 0.0
        %1501 = vmatprep.subr.mxu0 0.0
        %1502 = vmatpush1.msra.mxu0 0.0
        %1503 = vmatprep.subr.mxu0 0.0
        %1504 = vmatpush1.msra.mxu0 0.0
        %1505 = vmatprep.subr.mxu0 0.0
        %1506 = vmatpush1.msra.mxu0 0.0
        %1507 = vmatprep.subr.mxu0 0.0
        %1508 = vmatpush1.msra.mxu0 0.0
        %1509 = vmatprep.subr.mxu0 0.0
        %1510 = vmatpush1.msra.mxu0 0.0
        %1511 = vmatprep.subr.mxu0 0.0
        %1512 = vmatpush1.msra.mxu0 0.0
        %1513 = vmatprep.subr.mxu0 0.0
        %1514 = vmatpush1.msra.mxu0 0.0
        %1515 = vmatprep.subr.mxu0 0.0
        %1516 = vmatpush1.msra.mxu0 0.0
        %1517 = vmatprep.subr.mxu0 0.0
        %1518 = vmatpush1.msra.mxu0 0.0
        %1519 = vmatprep.subr.mxu0 0.0
        %1520 = vmatpush1.msra.mxu0 0.0
        %1521 = vmatprep.subr.mxu0 0.0
        %1522 = vmatpush1.msra.mxu0 0.0
        %1523 = vmatprep.subr.mxu0 0.0
        %1524 = vmatpush1.msra.mxu0 0.0
        %1525 = vmatprep.subr.mxu0 0.0
        %1526 = vmatpush1.msra.mxu0 0.0
        %1527 = vmatprep.subr.mxu0 0.0
        %1528 = vmatpush1.msra.mxu0 0.0
        %1529 = vmatprep.subr.mxu0 0.0
        %1530 = vmatpush1.msra.mxu0 0.0
        %1531 = vmatprep.subr.mxu0 0.0
        %1532 = vmatpush1.msra.mxu0 0.0
        %1533 = vmatprep.subr.mxu0 0.0
        %1534 = vmatpush1.msra.mxu0 0.0
        %1535 = vmatprep.subr.mxu0 0.0
        %1536 = vmatpush1.msra.mxu0 0.0
        %1537 = vmatprep.mubr.f32.mxu0 0.0
        %1538 = vmatmul.mubr.f32.gmra.mrb[0].mxu0 %v1471
        %v1539 = vpop.f32.mrb[0].mxu0
        %v1540 = vadd.f32 0.0, %v1539
        %v1541 = vpop.f32.mrb[0].mxu0
        %1542 = vdwg.mxu0
        %v1543 = vrcp.pop %v1540
        %1545 = vset.pattern.permute.xlu0 8
        %1546 = vperm.xlu0 %1545, %v1543
        %v1547 = vpop.permute.xlu0 %1546
        %v1549 = vmul.f32 %v1540, %v1547
        %1551 = vrot.lane.b32.xlu0 %v901, 8
        %v1552 = vpop.permute.xlu0 %1551
        %1555 = vrot.lane.b32.xlu0 %v1009, 16
        %v1556 = vpop.permute.xlu0 %1555
        %1559 = vrot.lane.b32.xlu0 %v1117, 24
        %v1560 = vpop.permute.xlu0 %1559
        %1563 = vrot.lane.b32.xlu0 %v1225, 32
        %v1564 = vpop.permute.xlu0 %1563
        %1567 = vrot.lane.b32.xlu0 %v1333, 40
        %v1568 = vpop.permute.xlu0 %1567
        %1571 = vrot.lane.b32.xlu0 %v1441, 48
        %v1572 = vpop.permute.xlu0 %1571
        %1575 = vrot.lane.b32.xlu0 %v1549, 56
        %v1576 = vpop.permute.xlu0 %1575
        %v1578 = vsel %vm640, %v791, %v1552
        %v1579 = vsel %vm405, %v1578, %v1556
        %vm1580 = vcmask 195584
        %v1581 = vsel %vm1580, %v1579, %v1560
        %vm1582 = vcmask 261120
        %v1583 = vsel %vm1582, %v1581, %v1564
        %vm1584 = vcmask 326656
        %v1585 = vsel %vm1584, %v1583, %v1568
        %vm1586 = vcmask 392192
        %v1587 = vsel %vm1586, %v1585, %v1572
        %vm1588 = vcmask 457728
        %v1589 = vsel %vm1588, %v1587, %v1576
        %vm1590 = vcmask 523264
        %v1591 = vsel %vm1590, %v1589, 0.0
        %v1592 = vld [vmem:[#allocation13] sm:$0x1]
        %v1594 = vlaneseq
        %v1595 = vshrl.u32 %v1594, 7
        %v1596 = vsub.s32 0, %v1595
        %v1597 = vrot.slane %v1592, %v1596
        %v1599 = vadd.f32 %v1591, %v1597
        %1600 = vst [vmem:[%s400] sm:$0xff] %v1599
        %s1601 = sand.u32 %s194, 1
        %s1602 = scalar_lea.sflag [#allocation4], %s1601
        %s1603 = sand.u32 %s194, 1
        %s1604 = smul.addr %s1603, 8
        %s1605 = scalar_lea.vmem [#allocation14], %s1604
        // Predicated region
        $region77: #{tpu_custom_call.1} parent=47 // pred_check
          %p1606 = pneg %p204
        $region78: #{tpu_custom_call.1} parent=47 // pred_check_branch
          %1608 = sbr.rel (%p1606) target = $region80
        $region79: #{tpu_custom_call.1} parent=47 // pred_region
          %s1610 = ssub.s32 128, 128
          %1611 = vsyncadd %s1602, %s1610
          %s1612 = smul.addr %s29, 128
          %s1613 = scalar_lea.hbm %s7, %s1612
          %s1615 = sshll.u32 %s1605, 4
          %s1616 = int_to_ptr.vmem [resolvable:$true] %s1615
          %1618 = dma.vmem_to_hbm [thread:$0]  %s1616, 128, %s1613, %s1602
        $region80: #{tpu_custom_call.1} parent=47 // pred_fallthru
          _
      $region48: #{tpu_custom_call.1} parent=5 // pred_fallthru
        _
      %p1619 = scmp.le.s32.totalorder 2, %s24
      // Predicated region
      $region81: #{tpu_custom_call.1} parent=5 // pred_check
        %p1620 = pneg %p1619
      $region82: #{tpu_custom_call.1} parent=5 // pred_check_branch
        %1622 = sbr.rel (%p1620) target = $region84
      $region83: #{tpu_custom_call.1} parent=5 // pred_region
        %s1623 = ssub.s32 %s24, 2
        // Predicated region
        $region85: #{tpu_custom_call.1} parent=83 // pred_check
          %p1624 = pneg %p210
        $region86: #{tpu_custom_call.1} parent=83 // pred_check_branch
          %1626 = sbr.rel (%p1624) target = $region88
        $region87: #{tpu_custom_call.1} parent=83 // pred_region
          %s1627 = sand.u32 %s195, 1
          %s1628 = scalar_lea.sflag [#allocation4], %s1627
          %s1629 = sand.u32 %s195, 1
          %s1630 = smul.addr %s1629, 8
          %s1631 = scalar_lea.vmem [#allocation14], %s1630
          %1632 = dma.done %s1628, 128
        $region88: #{tpu_custom_call.1} parent=83 // pred_fallthru
          _
      $region84: #{tpu_custom_call.1} parent=5 // pred_fallthru
        _
    $region6: #{tpu_custom_call.1} parent=1 // loop_footer
      %s28 = sadd.s32 1, %s24
    $region7: #{tpu_custom_call.1} parent=1 // loop_footer_branch
      %23 = sbr.rel target = $region3
    $region8: #{tpu_custom_call.1} parent=1 // loop_exit
      _
    %1633 = vsyncpa [#allocation3], 1
    %s1634 = scalar_lea.sflag [#allocation3], 1
    %1635 = vsyncpa %s1634, 1
    %1636 = vsyncpa [#allocation6], 1
    %s1637 = scalar_lea.sflag [#allocation6], 1
    %1638 = vsyncpa %s1637, 1
    %1639 = vsyncpa [#allocation9], 1
    %1640 = vsyncpa [#allocation12], 1
    %s1641 = scalar_lea.sflag [#allocation12], 1
    %1642 = vsyncpa %s1641, 1
    %1643 = vsyncpa [#allocation4], 1
    %s1644 = scalar_lea.sflag [#allocation4], 1
    %1645 = vsyncpa %s1644, 1

</llo_original>
